<compile_context>
chip_gen: v7x
topology: tpu7x:2x2x1
jax: 0.10.0
libtpu: 0.0.40
codegen_flags: <defaults>
</compile_context>

<pallas_src>
import numpy as np
import jax
import jax.numpy as jnp
from jax import lax
from jax.experimental import pallas as pl
from jax.experimental.pallas import tpu as pltpu


def _round_up(x, m):
    return ((x + m - 1) // m) * m


def _vmem_config():
    """(tile-selection budget, scoped vmem limit) derived from the chip's VMEM."""
    cap = 64 * 1024 * 1024                      # conservative default (v7x-sized)
    if hasattr(pltpu, "get_tpu_info"):
        try:
            info = pltpu.get_tpu_info()
            cap = int(getattr(info, "vmem_capacity_bytes", cap)) or cap
        except Exception:
            pass
    budget = min(int(cap * 0.45), 56 * 1024 * 1024)   # ~28 MiB on v7x, ~56 MiB on v5e/v6e
    limit = min(int(cap * 0.75), 100 * 1024 * 1024)   # ~48 MiB on v7x, ~96 MiB on v5e/v6e
    return budget, limit


def _pick_tile_h(N, H, W, p, k, Cin_p, Cout_p, itemsize, budget_bytes):
    """Largest even divisor of H whose per-step working set (with Mosaic's physical
    lane/sublane padding) fits the VMEM budget; prefer >=4 grid steps for megacore."""
    Wp = W // 2
    W2p = W + 2 * p
    halo = max(2 * p, 1)
    sub = 8 * (4 // itemsize)          # sublane granularity: 8 (f32) / 16 (bf16)

    def rup(a, m):
        return ((a + m - 1) // m) * m

    def est(t):
        lane_in = rup(Cin_p, 128)
        xm = 2 * t * rup(W2p, sub) * lane_in * itemsize              # main tile (dbl buf)
        xh = 2 * halo * rup(W2p, sub) * lane_in * itemsize           # halo (dbl buf)
        wb = 2 * rup(k * k * Cin_p, sub) * rup(Cout_p, 128) * itemsize
        bi = 2 * 8 * rup(Cout_p, 128) * 4
        ob = 2 * rup((t // 2) * Wp, 8) * rup(Cout_p, 128) * 4        # out tile (dbl buf)
        lhs = rup(t * W, sub) * rup(k * k * Cin_p, 128) * itemsize   # im2col scratch
        acc = rup(t * W, 8) * rup(Cout_p, 128) * 4                   # f32 matmul result
        return xm + xh + wb + bi + ob + lhs + 2 * acc                # 2x acc: pool temps

    cands = [t for t in range(2, H + 1, 2)
             if H % t == 0 and t > 2 * p
             and ((H // t) == 1 or ((t // 2) * Wp) % 8 == 0)]
    if not cands:
        return H
    fitting = [t for t in cands if est(t) <= budget_bytes] or [min(cands)]
    multi = [t for t in fitting if N * (H // t) >= 4]   # feed both v7x TensorCores
    return max(multi) if multi else max(fitting)


def _make_kernel(k, TILE_H, W, Cin_p, Cout_p):
    TH2, W2 = TILE_H // 2, W // 2
    M = TILE_H * W

    def kernel(xm_ref, xh_ref, w_ref, b_ref, o_ref, lhs_ref):
        # Build the im2col LHS (M, k*k*Cin_p) once per tile: one Cin_p-wide column
        # strip per conv tap, so the whole conv is a single MXU matmul with
        # K = k*k*Cin_p instead of k*k matmuls with K = Cin_p.
        for kh in range(k):
            for kw in range(k):
                t = kh * k + kw
                c0 = t * Cin_p
                rows_m = (TILE_H - kh) * W
                main = xm_ref[kh:TILE_H, kw:kw + W, :].reshape(rows_m, Cin_p)
                lhs_ref[0:rows_m, c0:c0 + Cin_p] = main
                if kh > 0:
                    # Rows that fall past this tile come from the small halo input.
                    tail = xh_ref[0:kh, kw:kw + W, :].reshape(kh * W, Cin_p)
                    lhs_ref[rows_m:M, c0:c0 + Cin_p] = tail

        # Single MXU matmul per tile, f32 accumulation.
        acc = jnp.dot(lhs_ref[...], w_ref[...], preferred_element_type=jnp.float32)

        # 2x2 mean pool as strided VPU adds (no pooling matmul); bias commutes with
        # the mean so it is added once, post-pool, in f32.
        r = acc.reshape(TH2, 2, W2, 2, Cout_p)
        pooled = (r[:, 0, :, 0, :] + r[:, 1, :, 0, :]
                  + r[:, 0, :, 1, :] + r[:, 1, :, 1, :]) * 0.25
        pooled = pooled + b_ref[...]
        o_ref[...] = pooled.reshape(TH2 * W2, Cout_p).astype(o_ref.dtype)

    return kernel


def _call_pallas(x_pad, x_halo, w_big, b_row, *, k, TILE_H, H, W, halo_rows,
                 Cin_p, Cout_p, compute_dtype, vmem_limit):
    N = x_pad.shape[0]
    W2p = x_pad.shape[2]
    num_tiles = H // TILE_H
    TH2, W2 = TILE_H // 2, W // 2
    Hp, Wp = H // 2, W // 2
    KK = k * k * Cin_p

    kernel = _make_kernel(k, TILE_H, W, Cin_p, Cout_p)

    return pl.pallas_call(
        kernel,
        out_shape=jax.ShapeDtypeStruct((N, Hp * Wp, Cout_p), jnp.float32),
        grid=(N, num_tiles),
        in_specs=[
            # Main tile: padded rows [i*TILE_H, i*TILE_H + TILE_H) read directly from
            # the padded input (partial trailing block is never indexed).
            pl.BlockSpec((None, TILE_H, W2p, Cin_p), lambda b, i: (b, i, 0, 0)),
            # Halo: padded rows [(i+1)*TILE_H, (i+1)*TILE_H + 2p) for tile i.
            pl.BlockSpec((None, None, halo_rows, W2p, Cin_p),
                         lambda b, i: (b, i, 0, 0, 0)),
            # Constants: constant block index => fetched once, never re-DMA'd.
            pl.BlockSpec((KK, Cout_p), lambda b, i: (0, 0)),
            pl.BlockSpec((1, Cout_p), lambda b, i: (0, 0)),
        ],
        out_specs=pl.BlockSpec((None, TH2 * W2, Cout_p), lambda b, i: (b, i, 0)),
        scratch_shapes=[pltpu.VMEM((TILE_H * W, KK), compute_dtype)],
        compiler_params=pltpu.CompilerParams(
            dimension_semantics=("parallel", "parallel"),
            vmem_limit_bytes=vmem_limit),
    )(x_pad, x_halo, w_big, b_row)


def conv_mean_pool(x, weight, bias, k_size, tile_h=None, compute_dtype=jnp.bfloat16):
    """x: (N, C_in, H, W), weight: (C_out, C_in, k, k), bias: (C_out,)
       -> (N, C_out, H//2, W//2).  Conv2d(stride=1, pad=(k-1)//2) + 2x2 mean pool."""
    N, Cin, H, W = x.shape
    Cout = weight.shape[0]
    k = int(k_size)
    p = (k - 1) // 2
    assert k % 2 == 1, "padding=(k-1)//2 matches 'same' only for odd k"
    assert H % 2 == 0 and W % 2 == 0, "2x2 mean pool assumes even spatial dims"

    compute_dtype = jnp.dtype(compute_dtype)
    Cin_p = _round_up(Cin, 8)
    Cout_p = _round_up(Cout, 128)     # lane-dense output -> unmasked stores
    W2p = W + 2 * p
    Hp, Wp = H // 2, W // 2

    budget, vmem_limit = _vmem_config()
    if tile_h is None:
        TILE_H = _pick_tile_h(N, H, W, p, k, Cin_p, Cout_p,
                              compute_dtype.itemsize, budget)
    else:
        TILE_H = int(tile_h)
    assert TILE_H % 2 == 0 and H % TILE_H == 0 and TILE_H > 2 * p
    num_tiles = H // TILE_H
    assert num_tiles == 1 or ((TILE_H // 2) * Wp) % 8 == 0
    halo_rows = max(2 * p, 1)

    # NHWC, spatial 'same' zero pad, channel pad; MXU operands cast once here
    # (bf16 halves x HBM/DMA bytes; the matmul still accumulates in f32).
    x_pad = jnp.pad(jnp.transpose(x, (0, 2, 3, 1)),
                    ((0, 0), (p, p), (p, p), (0, Cin_p - Cin))).astype(compute_dtype)
    if p > 0:
        # Halo rows for tile i: padded rows [(i+1)*TILE_H, (i+1)*TILE_H + 2p) — tiny.
        row_idx = ((jnp.arange(num_tiles)[:, None] + 1) * TILE_H
                   + jnp.arange(2 * p)[None, :])
        x_halo = x_pad[:, row_idx]                 # (N, nt, 2p, W2p, Cin_p)
    else:
        x_halo = jnp.zeros((N, num_tiles, halo_rows, W2p, Cin_p), x_pad.dtype)

    # Weight as one (k*k*Cin_p, Cout_p) matrix in (kh, kw, cin) row order, matching
    # the in-kernel im2col column order; bias as a padded f32 row.
    w_big = jnp.transpose(weight, (2, 3, 1, 0))    # (k, k, Cin, Cout)
    w_big = jnp.pad(w_big, ((0, 0), (0, 0), (0, Cin_p - Cin), (0, Cout_p - Cout)))
    w_big = w_big.reshape(k * k * Cin_p, Cout_p).astype(compute_dtype)
    b_row = jnp.pad(bias.reshape(1, Cout),
                    ((0, 0), (0, Cout_p - Cout))).astype(jnp.float32)

    out = _call_pallas(x_pad, x_halo, w_big, b_row, k=k, TILE_H=TILE_H, H=H, W=W,
                       halo_rows=halo_rows, Cin_p=Cin_p, Cout_p=Cout_p,
                       compute_dtype=compute_dtype, vmem_limit=vmem_limit)

    # (N, Hp*Wp, Cout_p) -> drop lane padding -> NCHW
    out = out[:, :, :Cout].reshape(N, Hp, Wp, Cout)
    return jnp.transpose(out, (0, 3, 1, 2)).astype(x.dtype)


def reference(x, weight, bias, k_size):
    pad = (k_size - 1) // 2
    conv = lax.conv_general_dilated(
        x, weight, window_strides=(1, 1),
        padding=[(pad, pad), (pad, pad)],
        dimension_numbers=("NCHW", "OIHW", "NCHW"))
    conv = conv + bias[None, :, None, None]
    return (conv[:, :, ::2, ::2] + conv[:, :, 1::2, ::2]
            + conv[:, :, ::2, 1::2] + conv[:, :, 1::2, 1::2]) / 4.0


if __name__ == "__main__":
    # Small shapes consistent with the module: n_input=4, n_output=8, k_size=3
    N, Cin, H, W = 2, 4, 16, 16
    Cout, k = 8, 3

    key = jax.random.PRNGKey(0)
    kx, kw_, kb = jax.random.split(key, 3)

    x = jax.random.normal(kx, (N, Cin, H, W), dtype=jnp.float32)
    # Deterministic init mimicking nn.Conv2d default (uniform in +-1/sqrt(fan_in))
    fan_in = Cin * k * k
    bound = 1.0 / np.sqrt(fan_in)
    weight = jax.random.uniform(kw_, (Cout, Cin, k, k), jnp.float32, -bound, bound)
    bias = jax.random.uniform(kb, (Cout,), jnp.float32, -bound, bound)

    ref = reference(x, weight, bias, k)

    # f32 path (auto-tiled => 2 H-tiles here): tight tolerance vs the f32 reference.
    out_f32 = jax.block_until_ready(
        conv_mean_pool(x, weight, bias, k, compute_dtype=jnp.float32))
    assert out_f32.shape == (N, Cout, H // 2, W // 2), out_f32.shape
    np.testing.assert_allclose(np.asarray(out_f32), np.asarray(ref),
                               rtol=1e-5, atol=1e-5)

    # Default bf16-MXU path (f32 accumulation): looser tolerance from the bf16 cast.
    out_bf16 = jax.block_until_ready(conv_mean_pool(x, weight, bias, k))
    np.testing.assert_allclose(np.asarray(out_bf16), np.asarray(ref),
                               rtol=3e-2, atol=3e-2)

    # Explicit small tile to exercise the halo / multi-tile output path.
    out_t = jax.block_until_ready(
        conv_mean_pool(x, weight, bias, k, tile_h=4, compute_dtype=jnp.float32))
    np.testing.assert_allclose(np.asarray(out_t), np.asarray(ref),
                               rtol=1e-5, atol=1e-5)

    print("KERNEL_OK")
</pallas_src>

<mosaic_0001>
module attributes {stable_mosaic.version = 11 : i64} {
  func.func @kernel(%arg0: i32, %arg1: i32, %arg2: memref<1x8x18x8xf32, #tpu.memory_space<vmem>>, %arg3: memref<1x1x2x18x8xf32, #tpu.memory_space<vmem>>, %arg4: memref<72x128xf32, #tpu.memory_space<vmem>>, %arg5: memref<1x128xf32, #tpu.memory_space<vmem>>, %arg6: memref<1x32x128xf32, #tpu.memory_space<vmem>>, %arg7: memref<128x72xf32, #tpu.memory_space<vmem>>) attributes {dimension_semantics = [#tpu.dimension_semantics<parallel>, #tpu.dimension_semantics<parallel>], iteration_bounds = array<i64: 2, 2>, scalar_prefetch = 0 : i64, scratch_operands = 1 : i64, tpu.core_type = #tpu.core_type<tc>, window_params = [{transform_indices = @transform_0, window_bounds = array<i64: 1, 8, 18, 8>}, {transform_indices = @transform_1, window_bounds = array<i64: 1, 1, 2, 18, 8>}, {pipeline_mode = #tpu.pipeline_mode<synchronous>, transform_indices = @transform_2, window_bounds = array<i64: 72, 128>}, {pipeline_mode = #tpu.pipeline_mode<synchronous>, transform_indices = @transform_3, window_bounds = array<i64: 1, 128>}, {transform_indices = @transform_4, window_bounds = array<i64: 1, 32, 128>}]} {
    %c0 = arith.constant 0 : index
    %c0_0 = arith.constant 0 : index
    %c0_1 = arith.constant 0 : index
    %c0_2 = arith.constant 0 : index
    %0 = vector.load %arg2[%c0, %c0_0, %c0_1, %c0_2] : memref<1x8x18x8xf32, #tpu.memory_space<vmem>>, vector<1x8x16x8xf32>
    %1 = vector.shape_cast %0 : vector<1x8x16x8xf32> to vector<8x16x8xf32>
    %2 = vector.shape_cast %1 : vector<8x16x8xf32> to vector<128x8xf32>
    %c0_3 = arith.constant 0 : index
    %c0_4 = arith.constant 0 : index
    %3 = vector.load %arg7[%c0_3, %c0_4] : memref<128x72xf32, #tpu.memory_space<vmem>>, vector<128x8xf32>
    tpu.vector_store %arg7[%c0_3, %c0_4], %2 {strides = array<i32>} : memref<128x72xf32, #tpu.memory_space<vmem>>, vector<128x8xf32>,
    %c0_5 = arith.constant 0 : index
    %c0_6 = arith.constant 0 : index
    %c1 = arith.constant 1 : index
    %c0_7 = arith.constant 0 : index
    %4 = vector.load %arg2[%c0_5, %c0_6, %c1, %c0_7] : memref<1x8x18x8xf32, #tpu.memory_space<vmem>>, vector<1x8x16x8xf32>
    %5 = vector.shape_cast %4 : vector<1x8x16x8xf32> to vector<8x16x8xf32>
    %6 = vector.shape_cast %5 : vector<8x16x8xf32> to vector<128x8xf32>
    %c0_8 = arith.constant 0 : index
    %c8 = arith.constant 8 : index
    %7 = vector.load %arg7[%c0_8, %c8] : memref<128x72xf32, #tpu.memory_space<vmem>>, vector<128x8xf32>
    tpu.vector_store %arg7[%c0_8, %c8], %6 {strides = array<i32>} : memref<128x72xf32, #tpu.memory_space<vmem>>, vector<128x8xf32>,
    %c0_9 = arith.constant 0 : index
    %c0_10 = arith.constant 0 : index
    %c2 = arith.constant 2 : index
    %c0_11 = arith.constant 0 : index
    %8 = vector.load %arg2[%c0_9, %c0_10, %c2, %c0_11] : memref<1x8x18x8xf32, #tpu.memory_space<vmem>>, vector<1x8x16x8xf32>
    %9 = vector.shape_cast %8 : vector<1x8x16x8xf32> to vector<8x16x8xf32>
    %10 = vector.shape_cast %9 : vector<8x16x8xf32> to vector<128x8xf32>
    %c0_12 = arith.constant 0 : index
    %c16 = arith.constant 16 : index
    %11 = vector.load %arg7[%c0_12, %c16] : memref<128x72xf32, #tpu.memory_space<vmem>>, vector<128x8xf32>
    tpu.vector_store %arg7[%c0_12, %c16], %10 {strides = array<i32>} : memref<128x72xf32, #tpu.memory_space<vmem>>, vector<128x8xf32>,
    %c0_13 = arith.constant 0 : index
    %c1_14 = arith.constant 1 : index
    %c0_15 = arith.constant 0 : index
    %c0_16 = arith.constant 0 : index
    %12 = vector.load %arg2[%c0_13, %c1_14, %c0_15, %c0_16] : memref<1x8x18x8xf32, #tpu.memory_space<vmem>>, vector<1x7x16x8xf32>
    %13 = vector.shape_cast %12 : vector<1x7x16x8xf32> to vector<7x16x8xf32>
    %14 = vector.shape_cast %13 : vector<7x16x8xf32> to vector<112x8xf32>
    %c0_17 = arith.constant 0 : index
    %c24 = arith.constant 24 : index
    %15 = vector.load %arg7[%c0_17, %c24] : memref<128x72xf32, #tpu.memory_space<vmem>>, vector<112x8xf32>
    tpu.vector_store %arg7[%c0_17, %c24], %14 {strides = array<i32>} : memref<128x72xf32, #tpu.memory_space<vmem>>, vector<112x8xf32>,
    %c0_18 = arith.constant 0 : index
    %c0_19 = arith.constant 0 : index
    %c0_20 = arith.constant 0 : index
    %c0_21 = arith.constant 0 : index
    %c0_22 = arith.constant 0 : index
    %16 = vector.load %arg3[%c0_18, %c0_19, %c0_20, %c0_21, %c0_22] : memref<1x1x2x18x8xf32, #tpu.memory_space<vmem>>, vector<1x1x1x16x8xf32>
    %17 = vector.shape_cast %16 : vector<1x1x1x16x8xf32> to vector<1x16x8xf32>
    %18 = vector.shape_cast %17 : vector<1x16x8xf32> to vector<16x8xf32>
    %c112 = arith.constant 112 : index
    %c24_23 = arith.constant 24 : index
    %19 = vector.load %arg7[%c112, %c24_23] : memref<128x72xf32, #tpu.memory_space<vmem>>, vector<16x8xf32>
    tpu.vector_store %arg7[%c112, %c24_23], %18 {strides = array<i32>} : memref<128x72xf32, #tpu.memory_space<vmem>>, vector<16x8xf32>,
    %c0_24 = arith.constant 0 : index
    %c1_25 = arith.constant 1 : index
    %c1_26 = arith.constant 1 : index
    %c0_27 = arith.constant 0 : index
    %20 = vector.load %arg2[%c0_24, %c1_25, %c1_26, %c0_27] : memref<1x8x18x8xf32, #tpu.memory_space<vmem>>, vector<1x7x16x8xf32>
    %21 = vector.shape_cast %20 : vector<1x7x16x8xf32> to vector<7x16x8xf32>
    %22 = vector.shape_cast %21 : vector<7x16x8xf32> to vector<112x8xf32>
    %c0_28 = arith.constant 0 : index
    %c32 = arith.constant 32 : index
    %23 = vector.load %arg7[%c0_28, %c32] : memref<128x72xf32, #tpu.memory_space<vmem>>, vector<112x8xf32>
    tpu.vector_store %arg7[%c0_28, %c32], %22 {strides = array<i32>} : memref<128x72xf32, #tpu.memory_space<vmem>>, vector<112x8xf32>,
    %c0_29 = arith.constant 0 : index
    %c0_30 = arith.constant 0 : index
    %c0_31 = arith.constant 0 : index
    %c1_32 = arith.constant 1 : index
    %c0_33 = arith.constant 0 : index
    %24 = vector.load %arg3[%c0_29, %c0_30, %c0_31, %c1_32, %c0_33] : memref<1x1x2x18x8xf32, #tpu.memory_space<vmem>>, vector<1x1x1x16x8xf32>
    %25 = vector.shape_cast %24 : vector<1x1x1x16x8xf32> to vector<1x16x8xf32>
    %26 = vector.shape_cast %25 : vector<1x16x8xf32> to vector<16x8xf32>
    %c112_34 = arith.constant 112 : index
    %c32_35 = arith.constant 32 : index
    %27 = vector.load %arg7[%c112_34, %c32_35] : memref<128x72xf32, #tpu.memory_space<vmem>>, vector<16x8xf32>
    tpu.vector_store %arg7[%c112_34, %c32_35], %26 {strides = array<i32>} : memref<128x72xf32, #tpu.memory_space<vmem>>, vector<16x8xf32>,
    %c0_36 = arith.constant 0 : index
    %c1_37 = arith.constant 1 : index
    %c2_38 = arith.constant 2 : index
    %c0_39 = arith.constant 0 : index
    %28 = vector.load %arg2[%c0_36, %c1_37, %c2_38, %c0_39] : memref<1x8x18x8xf32, #tpu.memory_space<vmem>>, vector<1x7x16x8xf32>
    %29 = vector.shape_cast %28 : vector<1x7x16x8xf32> to vector<7x16x8xf32>
    %30 = vector.shape_cast %29 : vector<7x16x8xf32> to vector<112x8xf32>
    %c0_40 = arith.constant 0 : index
    %c40 = arith.constant 40 : index
    %31 = vector.load %arg7[%c0_40, %c40] : memref<128x72xf32, #tpu.memory_space<vmem>>, vector<112x8xf32>
    tpu.vector_store %arg7[%c0_40, %c40], %30 {strides = array<i32>} : memref<128x72xf32, #tpu.memory_space<vmem>>, vector<112x8xf32>,
    %c0_41 = arith.constant 0 : index
    %c0_42 = arith.constant 0 : index
    %c0_43 = arith.constant 0 : index
    %c2_44 = arith.constant 2 : index
    %c0_45 = arith.constant 0 : index
    %32 = vector.load %arg3[%c0_41, %c0_42, %c0_43, %c2_44, %c0_45] : memref<1x1x2x18x8xf32, #tpu.memory_space<vmem>>, vector<1x1x1x16x8xf32>
    %33 = vector.shape_cast %32 : vector<1x1x1x16x8xf32> to vector<1x16x8xf32>
    %34 = vector.shape_cast %33 : vector<1x16x8xf32> to vector<16x8xf32>
    %c112_46 = arith.constant 112 : index
    %c40_47 = arith.constant 40 : index
    %35 = vector.load %arg7[%c112_46, %c40_47] : memref<128x72xf32, #tpu.memory_space<vmem>>, vector<16x8xf32>
    tpu.vector_store %arg7[%c112_46, %c40_47], %34 {strides = array<i32>} : memref<128x72xf32, #tpu.memory_space<vmem>>, vector<16x8xf32>,
    %c0_48 = arith.constant 0 : index
    %c2_49 = arith.constant 2 : index
    %c0_50 = arith.constant 0 : index
    %c0_51 = arith.constant 0 : index
    %36 = vector.load %arg2[%c0_48, %c2_49, %c0_50, %c0_51] : memref<1x8x18x8xf32, #tpu.memory_space<vmem>>, vector<1x6x16x8xf32>
    %37 = vector.shape_cast %36 : vector<1x6x16x8xf32> to vector<6x16x8xf32>
    %38 = vector.shape_cast %37 : vector<6x16x8xf32> to vector<96x8xf32>
    %c0_52 = arith.constant 0 : index
    %c48 = arith.constant 48 : index
    %39 = vector.load %arg7[%c0_52, %c48] : memref<128x72xf32, #tpu.memory_space<vmem>>, vector<96x8xf32>
    tpu.vector_store %arg7[%c0_52, %c48], %38 {strides = array<i32>} : memref<128x72xf32, #tpu.memory_space<vmem>>, vector<96x8xf32>,
    %c0_53 = arith.constant 0 : index
    %c0_54 = arith.constant 0 : index
    %c0_55 = arith.constant 0 : index
    %c0_56 = arith.constant 0 : index
    %c0_57 = arith.constant 0 : index
    %40 = vector.load %arg3[%c0_53, %c0_54, %c0_55, %c0_56, %c0_57] : memref<1x1x2x18x8xf32, #tpu.memory_space<vmem>>, vector<1x1x2x16x8xf32>
    %41 = vector.shape_cast %40 : vector<1x1x2x16x8xf32> to vector<2x16x8xf32>
    %42 = vector.shape_cast %41 : vector<2x16x8xf32> to vector<32x8xf32>
    %c96 = arith.constant 96 : index
    %c48_58 = arith.constant 48 : index
    %43 = vector.load %arg7[%c96, %c48_58] : memref<128x72xf32, #tpu.memory_space<vmem>>, vector<32x8xf32>
    tpu.vector_store %arg7[%c96, %c48_58], %42 {strides = array<i32>} : memref<128x72xf32, #tpu.memory_space<vmem>>, vector<32x8xf32>,
    %c0_59 = arith.constant 0 : index
    %c2_60 = arith.constant 2 : index
    %c1_61 = arith.constant 1 : index
    %c0_62 = arith.constant 0 : index
    %44 = vector.load %arg2[%c0_59, %c2_60, %c1_61, %c0_62] : memref<1x8x18x8xf32, #tpu.memory_space<vmem>>, vector<1x6x16x8xf32>
    %45 = vector.shape_cast %44 : vector<1x6x16x8xf32> to vector<6x16x8xf32>
    %46 = vector.shape_cast %45 : vector<6x16x8xf32> to vector<96x8xf32>
    %c0_63 = arith.constant 0 : index
    %c56 = arith.constant 56 : index
    %47 = vector.load %arg7[%c0_63, %c56] : memref<128x72xf32, #tpu.memory_space<vmem>>, vector<96x8xf32>
    tpu.vector_store %arg7[%c0_63, %c56], %46 {strides = array<i32>} : memref<128x72xf32, #tpu.memory_space<vmem>>, vector<96x8xf32>,
    %c0_64 = arith.constant 0 : index
    %c0_65 = arith.constant 0 : index
    %c0_66 = arith.constant 0 : index
    %c1_67 = arith.constant 1 : index
    %c0_68 = arith.constant 0 : index
    %48 = vector.load %arg3[%c0_64, %c0_65, %c0_66, %c1_67, %c0_68] : memref<1x1x2x18x8xf32, #tpu.memory_space<vmem>>, vector<1x1x2x16x8xf32>
    %49 = vector.shape_cast %48 : vector<1x1x2x16x8xf32> to vector<2x16x8xf32>
    %50 = vector.shape_cast %49 : vector<2x16x8xf32> to vector<32x8xf32>
    %c96_69 = arith.constant 96 : index
    %c56_70 = arith.constant 56 : index
    %51 = vector.load %arg7[%c96_69, %c56_70] : memref<128x72xf32, #tpu.memory_space<vmem>>, vector<32x8xf32>
    tpu.vector_store %arg7[%c96_69, %c56_70], %50 {strides = array<i32>} : memref<128x72xf32, #tpu.memory_space<vmem>>, vector<32x8xf32>,
    %c0_71 = arith.constant 0 : index
    %c2_72 = arith.constant 2 : index
    %c2_73 = arith.constant 2 : index
    %c0_74 = arith.constant 0 : index
    %52 = vector.load %arg2[%c0_71, %c2_72, %c2_73, %c0_74] : memref<1x8x18x8xf32, #tpu.memory_space<vmem>>, vector<1x6x16x8xf32>
    %53 = vector.shape_cast %52 : vector<1x6x16x8xf32> to vector<6x16x8xf32>
    %54 = vector.shape_cast %53 : vector<6x16x8xf32> to vector<96x8xf32>
    %c0_75 = arith.constant 0 : index
    %c64 = arith.constant 64 : index
    %55 = vector.load %arg7[%c0_75, %c64] : memref<128x72xf32, #tpu.memory_space<vmem>>, vector<96x8xf32>
    tpu.vector_store %arg7[%c0_75, %c64], %54 {strides = array<i32>} : memref<128x72xf32, #tpu.memory_space<vmem>>, vector<96x8xf32>,
    %c0_76 = arith.constant 0 : index
    %c0_77 = arith.constant 0 : index
    %c0_78 = arith.constant 0 : index
    %c2_79 = arith.constant 2 : index
    %c0_80 = arith.constant 0 : index
    %56 = vector.load %arg3[%c0_76, %c0_77, %c0_78, %c2_79, %c0_80] : memref<1x1x2x18x8xf32, #tpu.memory_space<vmem>>, vector<1x1x2x16x8xf32>
    %57 = vector.shape_cast %56 : vector<1x1x2x16x8xf32> to vector<2x16x8xf32>
    %58 = vector.shape_cast %57 : vector<2x16x8xf32> to vector<32x8xf32>
    %c96_81 = arith.constant 96 : index
    %c64_82 = arith.constant 64 : index
    %59 = vector.load %arg7[%c96_81, %c64_82] : memref<128x72xf32, #tpu.memory_space<vmem>>, vector<32x8xf32>
    tpu.vector_store %arg7[%c96_81, %c64_82], %58 {strides = array<i32>} : memref<128x72xf32, #tpu.memory_space<vmem>>, vector<32x8xf32>,
    %c0_83 = arith.constant 0 : index
    %c0_84 = arith.constant 0 : index
    %60 = vector.load %arg7[%c0_83, %c0_84] : memref<128x72xf32, #tpu.memory_space<vmem>>, vector<128x72xf32>
    %c0_85 = arith.constant 0 : index
    %c0_86 = arith.constant 0 : index
    %61 = vector.load %arg4[%c0_85, %c0_86] : memref<72x128xf32, #tpu.memory_space<vmem>>, vector<72x128xf32>
    %cst = arith.constant dense<0.000000e+00> : vector<128x128xf32>
    %62 = tpu.matmul %60, %61, %cst {dimension_numbers = #tpu.dot_dimension_numbers<[1], [0], [0], [1], [0, 0, 1, 1], [], []>} : vector<128x72xf32>, vector<72x128xf32>, vector<128x128xf32> -> vector<128x128xf32>
    %63 = vector.shape_cast %62 : vector<128x128xf32> to vector<4x2x8x2x128xf32>
    %64 = vector.extract_strided_slice %63 {offsets = [0, 0, 0, 0, 0], sizes = [4, 1, 8, 1, 128], strides = [1, 1, 1, 1, 1]} : vector<4x2x8x2x128xf32> to vector<4x1x8x1x128xf32>
    %65 = vector.shape_cast %64 : vector<4x1x8x1x128xf32> to vector<4x8x128xf32>
    %66 = vector.extract_strided_slice %63 {offsets = [0, 1, 0, 0, 0], sizes = [4, 1, 8, 1, 128], strides = [1, 1, 1, 1, 1]} : vector<4x2x8x2x128xf32> to vector<4x1x8x1x128xf32>
    %67 = vector.shape_cast %66 : vector<4x1x8x1x128xf32> to vector<4x8x128xf32>
    %68 = arith.addf %65, %67 : vector<4x8x128xf32>
    %69 = vector.extract_strided_slice %63 {offsets = [0, 0, 0, 1, 0], sizes = [4, 1, 8, 1, 128], strides = [1, 1, 1, 1, 1]} : vector<4x2x8x2x128xf32> to vector<4x1x8x1x128xf32>
    %70 = vector.shape_cast %69 : vector<4x1x8x1x128xf32> to vector<4x8x128xf32>
    %71 = arith.addf %68, %70 : vector<4x8x128xf32>
    %72 = vector.extract_strided_slice %63 {offsets = [0, 1, 0, 1, 0], sizes = [4, 1, 8, 1, 128], strides = [1, 1, 1, 1, 1]} : vector<4x2x8x2x128xf32> to vector<4x1x8x1x128xf32>
    %73 = vector.shape_cast %72 : vector<4x1x8x1x128xf32> to vector<4x8x128xf32>
    %74 = arith.addf %71, %73 : vector<4x8x128xf32>
    %cst_87 = arith.constant 2.500000e-01 : f32
    %75 = vector.broadcast %cst_87 : f32 to vector<4x8x128xf32>
    %76 = arith.mulf %74, %75 : vector<4x8x128xf32>
    %c0_88 = arith.constant 0 : index
    %c0_89 = arith.constant 0 : index
    %77 = vector.load %arg5[%c0_88, %c0_89] : memref<1x128xf32, #tpu.memory_space<vmem>>, vector<1x128xf32>
    %78 = vector.shape_cast %77 : vector<1x128xf32> to vector<1x1x128xf32>
    %79 = vector.broadcast %78 : vector<1x1x128xf32> to vector<4x8x128xf32>
    %80 = arith.addf %76, %79 : vector<4x8x128xf32>
    %81 = vector.shape_cast %80 : vector<4x8x128xf32> to vector<32x128xf32>
    %c0_90 = arith.constant 0 : index
    %c0_91 = arith.constant 0 : index
    %c0_92 = arith.constant 0 : index
    %82 = vector.load %arg6[%c0_90, %c0_91, %c0_92] : memref<1x32x128xf32, #tpu.memory_space<vmem>>, vector<1x32x128xf32>
    %83 = vector.shape_cast %82 : vector<1x32x128xf32> to vector<32x128xf32>
    %84 = vector.shape_cast %81 : vector<32x128xf32> to vector<1x32x128xf32>
    tpu.vector_store %arg6[%c0_90, %c0_91, %c0_92], %84 {strides = array<i32>} : memref<1x32x128xf32, #tpu.memory_space<vmem>>, vector<1x32x128xf32>,
    return
  }
  func.func @transform_0(%arg0: i32, %arg1: i32) -> (i32, i32, i32, i32) {
    %c0_i32 = arith.constant 0 : i32
    %c0_i32_0 = arith.constant 0 : i32
    %c0_i32_1 = arith.constant 0 : i32
    return %arg0, %arg1, %c0_i32, %c0_i32_0 : i32, i32, i32, i32
  }
  func.func @transform_1(%arg0: i32, %arg1: i32) -> (i32, i32, i32, i32, i32) {
    %c0_i32 = arith.constant 0 : i32
    %c0_i32_0 = arith.constant 0 : i32
    %c0_i32_1 = arith.constant 0 : i32
    %c0_i32_2 = arith.constant 0 : i32
    return %arg0, %arg1, %c0_i32, %c0_i32_0, %c0_i32_1 : i32, i32, i32, i32, i32
  }
  func.func @transform_2(%arg0: i32, %arg1: i32) -> (i32, i32) {
    %c0_i32 = arith.constant 0 : i32
    %c0_i32_0 = arith.constant 0 : i32
    %c0_i32_1 = arith.constant 0 : i32
    return %c0_i32, %c0_i32_0 : i32, i32
  }
  func.func @transform_3(%arg0: i32, %arg1: i32) -> (i32, i32) {
    %c0_i32 = arith.constant 0 : i32
    %c0_i32_0 = arith.constant 0 : i32
    %c0_i32_1 = arith.constant 0 : i32
    return %c0_i32, %c0_i32_0 : i32, i32
  }
  func.func @transform_4(%arg0: i32, %arg1: i32) -> (i32, i32, i32) {
    %c0_i32 = arith.constant 0 : i32
    %c0_i32_0 = arith.constant 0 : i32
    return %arg0, %arg1, %c0_i32 : i32, i32, i32
  }
}

</mosaic_0001>

<llo_original>
// kernel: tpu_custom_call.1
$region0: #{tpu_custom_call.1}
  #allocation0 [shape = 'u32[]', space=smem, size = 0x4, offset = 0x4, fixed_abs, tag = 'smem constant byte address 0x4 - core index']
  #allocation1 [shape = 'u32[144,128]{1,0:T(1,128)}', space=vmem, size = 0x12000, scoped, tag = 'internal scratch']
  #allocation2 [shape = 'f32[128,72]{1,0:T(8,128)}', space=vmem, size = 0x10000, scoped, tag = 'scratch operand']
  %s0 = inlined_call_operand.vmem [shape: f32[2,18,18,8], index: 0, kind: input, shape index: {}]
  %s1 = inlined_call_operand.vmem [shape: f32[2,2,2,18,8], index: 1, kind: input, shape index: {}]
  %s2 = inlined_call_operand.vmem [shape: f32[72,128], index: 2, kind: input, shape index: {}]
  %s3 = inlined_call_operand.vmem [shape: f32[1,128], index: 3, kind: input, shape index: {}]
  %s4 = inlined_call_operand.hbm [shape: f32[2,64,128], index: 4, kind: output, shape index: {}]
  %s5 = sld [smem:[#allocation0]]
  $region49: #{tpu_custom_call.1} parent=0
    _
  %s7 = ssub.s32 1, %s5
  %s8 = scalar_select 0, %s7, %s5
  $region1: #{tpu_custom_call.1} parent=0
    #allocation3 [shape = 'u8[32768]{0}', space=vmem, size = 0x8000, scoped, tag = 'output window, operand 0']
    #allocation4 [shape = 's32[2]{0}', space=sflag, size = 0x8, scoped, tag = 'scoped memory for tpu_custom_call.1']
    %9 = vsyncpa [#allocation4], 0
    %s10 = scalar_lea.sflag [#allocation4], 1
    %11 = vsyncpa %s10, 0
    loop: start=0, step=1, limit=6
    $region2: #{tpu_custom_call.1} parent=1 // loop_pre_header
      _
    $region3: #{tpu_custom_call.1} parent=1 // loop_header
      %s13 = sphi 0, %s17
      %p14 = scmp.ge.s32.totalorder %s13, 6
      %s20 = sphi 0, %s32
      %s21 = sphi 0, %s28
      %s22 = sphi 0, %s20
      %s23 = sphi 0, %s21
      %s24 = sphi 0, %s22
      %s25 = sphi 0, %s23
      %s37 = sphi 0, %s39
      %s40 = sphi 0, %s37
      %s41 = sphi 0, %s40
      %s57 = sphi 0, %s41
      %s65 = sphi 0, %s67
      %s68 = sphi 0, %s65
      %s69 = sphi 0, %s68
      %s85 = sphi 0, %s69
      %s89 = sphi 0, %s89
      %s91 = sphi 0, %s89
      %s92 = sphi 0, %s91
      %s106 = sphi 0, %s92
      %s110 = sphi 0, %s110
      %s112 = sphi 0, %s110
      %s113 = sphi 0, %s112
      %s127 = sphi 0, %s113
      %s135 = sphi 0, %s137
      %s138 = sphi 0, %s135
      %s139 = sphi 0, %s138
      %s155 = sphi 0, %s139
    $region4: #{tpu_custom_call.1} parent=1 // loop_header_branch
      %16 = sbr.rel (%p14) target = $region8
    $region5: #{tpu_custom_call.1} parent=1 // loop_body
      %s18 = ssub.s32 %s13, 1
      %s19 = ssub.s32 %s13, 2
      %s26 = sadd.s32 1, %s21
      %p27 = scmp.ge.s32.totalorder %s26, 2
      %s28 = scalar_select %p27, 0, %s26
      %s29 = sadd.s32 1, %s20
      %s30 = scalar_select %p27, %s29, %s20
      %p31 = scmp.ge.s32.totalorder %s30, 2
      %s32 = scalar_select %p31, 0, %s30
      %s33 = ssub.s32 %s20, %s32
      %s34 = ssub.s32 %s21, %s28
      %s35 = sor.u32 %s33, %s34
      %p36 = scmp.eq.s32.totalorder %s35, 0
      %s38 = sadd.s32 %s37, 1
      %s39 = scalar_select %p36, %s37, %s38
      %p42 = pneg %p36
      %p43 = scmp.eq.s32.totalorder %s13, 3
      %p44 = por %p42, %p43
      %p45 = scmp.ne.s32.totalorder %s37, %s40
      %p46 = scmp.eq.s32.totalorder %s13, 0
      %p47 = por %p45, %p46
      %p48 = scmp.ne.s32.totalorder %s37, %s40
      %p49 = scmp.eq.s32.totalorder %s18, 3
      %p50 = por %p48, %p49
      %p51 = scmp.ne.s32.totalorder %s40, %s41
      %p52 = scmp.eq.s32.totalorder %s18, 0
      %p53 = por %p51, %p52
      %p54 = scmp.ne.s32.totalorder %s40, %s41
      %p55 = scmp.eq.s32.totalorder %s19, 3
      %p56 = por %p54, %p55
      %p58 = scmp.ne.s32.totalorder %s41, %s57
      %p59 = scmp.eq.s32.totalorder %s19, 0
      %p60 = por %p58, %p59
      %s61 = ssub.s32 %s20, %s32
      %s62 = ssub.s32 %s21, %s28
      %s63 = sor.u32 %s61, %s62
      %p64 = scmp.eq.s32.totalorder %s63, 0
      %s66 = sadd.s32 %s65, 1
      %s67 = scalar_select %p64, %s65, %s66
      %p70 = pneg %p64
      %p71 = scmp.eq.s32.totalorder %s13, 3
      %p72 = por %p70, %p71
      %p73 = scmp.ne.s32.totalorder %s65, %s68
      %p74 = scmp.eq.s32.totalorder %s13, 0
      %p75 = por %p73, %p74
      %p76 = scmp.ne.s32.totalorder %s65, %s68
      %p77 = scmp.eq.s32.totalorder %s18, 3
      %p78 = por %p76, %p77
      %p79 = scmp.ne.s32.totalorder %s68, %s69
      %p80 = scmp.eq.s32.totalorder %s18, 0
      %p81 = por %p79, %p80
      %p82 = scmp.ne.s32.totalorder %s68, %s69
      %p83 = scmp.eq.s32.totalorder %s19, 3
      %p84 = por %p82, %p83
      %p86 = scmp.ne.s32.totalorder %s69, %s85
      %p87 = scmp.eq.s32.totalorder %s19, 0
      %p88 = por %p86, %p87
      %s90 = sadd.s32 %s89, 1
      %p93 = scmp.eq.s32.totalorder %s13, 3
      %p94 = scmp.ne.s32.totalorder %s89, %s91
      %p95 = scmp.eq.s32.totalorder %s13, 0
      %p96 = por %p94, %p95
      %p97 = scmp.ne.s32.totalorder %s89, %s91
      %p98 = scmp.eq.s32.totalorder %s18, 3
      %p99 = por %p97, %p98
      %p100 = scmp.ne.s32.totalorder %s91, %s92
      %p101 = scmp.eq.s32.totalorder %s18, 0
      %p102 = por %p100, %p101
      %p103 = scmp.ne.s32.totalorder %s91, %s92
      %p104 = scmp.eq.s32.totalorder %s19, 3
      %p105 = por %p103, %p104
      %p107 = scmp.ne.s32.totalorder %s92, %s106
      %p108 = scmp.eq.s32.totalorder %s19, 0
      %p109 = por %p107, %p108
      %s111 = sadd.s32 %s110, 1
      %p114 = scmp.eq.s32.totalorder %s13, 3
      %p115 = scmp.ne.s32.totalorder %s110, %s112
      %p116 = scmp.eq.s32.totalorder %s13, 0
      %p117 = por %p115, %p116
      %p118 = scmp.ne.s32.totalorder %s110, %s112
      %p119 = scmp.eq.s32.totalorder %s18, 3
      %p120 = por %p118, %p119
      %p121 = scmp.ne.s32.totalorder %s112, %s113
      %p122 = scmp.eq.s32.totalorder %s18, 0
      %p123 = por %p121, %p122
      %p124 = scmp.ne.s32.totalorder %s112, %s113
      %p125 = scmp.eq.s32.totalorder %s19, 3
      %p126 = por %p124, %p125
      %p128 = scmp.ne.s32.totalorder %s113, %s127
      %p129 = scmp.eq.s32.totalorder %s19, 0
      %p130 = por %p128, %p129
      %s131 = ssub.s32 %s20, %s32
      %s132 = ssub.s32 %s21, %s28
      %s133 = sor.u32 %s131, %s132
      %p134 = scmp.eq.s32.totalorder %s133, 0
      %s136 = sadd.s32 %s135, 1
      %s137 = scalar_select %p134, %s135, %s136
      %p140 = pneg %p134
      %p141 = scmp.eq.s32.totalorder %s13, 3
      %p142 = por %p140, %p141
      %p143 = scmp.ne.s32.totalorder %s135, %s138
      %p144 = scmp.eq.s32.totalorder %s13, 0
      %p145 = por %p143, %p144
      %p146 = scmp.ne.s32.totalorder %s135, %s138
      %p147 = scmp.eq.s32.totalorder %s18, 3
      %p148 = por %p146, %p147
      %p149 = scmp.ne.s32.totalorder %s138, %s139
      %p150 = scmp.eq.s32.totalorder %s18, 0
      %p151 = por %p149, %p150
      %p152 = scmp.ne.s32.totalorder %s138, %s139
      %p153 = scmp.eq.s32.totalorder %s19, 3
      %p154 = por %p152, %p153
      %p156 = scmp.ne.s32.totalorder %s139, %s155
      %p157 = scmp.eq.s32.totalorder %s19, 0
      %p158 = por %p156, %p157
      %p159 = scmp.le.s32.totalorder 1, %s13
      %p160 = scmp.lt.s32.totalorder %s13, 5
      %p161 = pnand %p159, %p160
      %p162 = pneg %p161
      // Predicated region
      $region9: #{tpu_custom_call.1} parent=5 // pred_check
        _
      $region10: #{tpu_custom_call.1} parent=5 // pred_check_branch
        %164 = sbr.rel (%p161) target = $region12
      $region11: #{tpu_custom_call.1} parent=5 // pred_region
        %s165 = ssub.s32 %s13, 1
        // Predicated region
        $region13: #{tpu_custom_call.1} parent=11 // pred_check
          %p166 = pneg %p102
        $region14: #{tpu_custom_call.1} parent=11 // pred_check_branch
          %168 = sbr.rel (%p166) target = $region16
        $region15: #{tpu_custom_call.1} parent=11 // pred_region
          _
        $region16: #{tpu_custom_call.1} parent=11 // pred_fallthru
          _
        // Predicated region
        $region17: #{tpu_custom_call.1} parent=11 // pred_check
          %p169 = pneg %p123
        $region18: #{tpu_custom_call.1} parent=11 // pred_check_branch
          %171 = sbr.rel (%p169) target = $region20
        $region19: #{tpu_custom_call.1} parent=11 // pred_region
          _
        $region20: #{tpu_custom_call.1} parent=11 // pred_fallthru
          _
      $region12: #{tpu_custom_call.1} parent=5 // pred_fallthru
        _
      %p172 = scmp.lt.s32.totalorder %s13, 4
      // Predicated region
      $region21: #{tpu_custom_call.1} parent=5 // pred_check
        %p173 = pneg %p172
      $region22: #{tpu_custom_call.1} parent=5 // pred_check_branch
        %175 = sbr.rel (%p173) target = $region24
      $region23: #{tpu_custom_call.1} parent=5 // pred_region
        // Predicated region
        $region25: #{tpu_custom_call.1} parent=23 // pred_check
          %p176 = pneg %p47
        $region26: #{tpu_custom_call.1} parent=23 // pred_check_branch
          %178 = sbr.rel (%p176) target = $region28
        $region27: #{tpu_custom_call.1} parent=23 // pred_region
          %s179 = smul.u32 8, %s21
          %s180 = ssub.s32 18, %s179
          %p181 = scmp.lt.s32.totalorder %s180, 8
          %s182 = scalar_select %p181, %s180, 8
          %s183 = smul.u32 128, %s182
          %s184 = smul.u32 %s183, 3
          %p185 = scmp.lt.s32.totalorder %s20, 1
          %s186 = scalar_select %p185, %s20, 1
          %p187 = scmp.lt.s32.totalorder %s179, 17
          %s188 = scalar_select %p187, %s179, 17
          %s189 = smul.addr %s188, 3
          %s190 = smul.addr %s186, 54
          %s191 = sadd.s32 %s189, %s190
          %s192 = smul.addr %s191, 8
          %s193 = scalar_lea.vmem %s0, %s192
          %s194 = smul.u32 8, %s21
          %s195 = ssub.s32 18, %s194
          %p196 = scmp.lt.s32.totalorder %s195, 8
          %s197 = scalar_select %p196, %s195, 8
          %s198 = smul.u32 128, %s197
          %s199 = smul.u32 %s198, 3
        $region28: #{tpu_custom_call.1} parent=23 // pred_fallthru
          _
        // Predicated region
        $region29: #{tpu_custom_call.1} parent=23 // pred_check
          %p200 = pneg %p75
        $region30: #{tpu_custom_call.1} parent=23 // pred_check_branch
          %202 = sbr.rel (%p200) target = $region32
        $region31: #{tpu_custom_call.1} parent=23 // pred_region
          %p203 = scmp.lt.s32.totalorder %s20, 1
          %s204 = scalar_select %p203, %s20, 1
          %p205 = scmp.lt.s32.totalorder %s21, 1
          %s206 = scalar_select %p205, %s21, 1
          %s207 = smul.addr %s206, 6
          %s208 = smul.addr %s204, 12
          %s209 = sadd.s32 %s207, %s208
          %s210 = smul.addr %s209, 8
          %s211 = scalar_lea.vmem %s1, %s210
        $region32: #{tpu_custom_call.1} parent=23 // pred_fallthru
          _
      $region24: #{tpu_custom_call.1} parent=5 // pred_fallthru
        _
      %p212 = scmp.le.s32.totalorder 1, %s13
      %p213 = scmp.lt.s32.totalorder %s13, 5
      %p214 = pnand %p212, %p213
      %p215 = pneg %p214
      // Predicated region
      $region33: #{tpu_custom_call.1} parent=5 // pred_check
        _
      $region34: #{tpu_custom_call.1} parent=5 // pred_check_branch
        %217 = sbr.rel (%p214) target = $region36
      $region35: #{tpu_custom_call.1} parent=5 // pred_region
        %s218 = ssub.s32 %s13, 1
        %s219 = smul.u32 8, %s23
        %s220 = ssub.s32 18, %s219
        %p221 = scmp.lt.s32.totalorder %s220, 8
        %s222 = scalar_select %p221, %s220, 8
        %s223 = smul.u32 128, %s222
        %s224 = smul.u32 %s223, 3
        %p225 = scmp.lt.s32.totalorder %s22, 1
        %s226 = scalar_select %p225, %s22, 1
        %p227 = scmp.lt.s32.totalorder %s219, 17
        %s228 = scalar_select %p227, %s219, 17
        %s229 = smul.addr %s228, 3
        %s230 = smul.addr %s226, 54
        %s231 = sadd.s32 %s229, %s230
        %s232 = smul.addr %s231, 8
        %s233 = scalar_lea.vmem %s0, %s232
        %p234 = pneg %p53
        %p235 = pneg %p50
        %p236 = scmp.lt.s32.totalorder %s22, 1
        %s237 = scalar_select %p236, %s22, 1
        %p238 = scmp.lt.s32.totalorder %s23, 1
        %s239 = scalar_select %p238, %s23, 1
        %s240 = smul.addr %s239, 6
        %s241 = smul.addr %s237, 12
        %s242 = sadd.s32 %s240, %s241
        %s243 = smul.addr %s242, 8
        %s244 = scalar_lea.vmem %s1, %s243
        %p245 = pneg %p81
        %p246 = pneg %p78
        %p247 = pneg %p102
        %p248 = pneg %p99
        %p249 = pneg %p123
        %p250 = pneg %p120
        %p251 = pneg %p151
        %p252 = pneg %p148
        %s253 = sand.u32 %s138, 1
        %s254 = scalar_lea.sflag [#allocation4], %s253
        %s255 = sand.u32 %s138, 1
        %s256 = smul.addr %s255, 32
        %s257 = scalar_lea.vmem [#allocation3], %s256
        %s258 = smul.u32 8, %s23
        %s259 = ssub.s32 18, %s258
        %p260 = scmp.lt.s32.totalorder %s259, 8
        %s261 = scalar_select %p260, %s259, 8
        %s262 = smul.u32 128, %s261
        %s263 = smul.u32 %s262, 3
        %p264 = scmp.lt.s32.totalorder %s22, 1
        %s265 = scalar_select %p264, %s22, 1
        %p266 = scmp.lt.s32.totalorder %s258, 17
        %s267 = scalar_select %p266, %s258, 17
        %s268 = smul.addr %s267, 3
        %s269 = smul.addr %s265, 54
        %s270 = sadd.s32 %s268, %s269
        %s271 = smul.addr %s270, 8
        %s272 = scalar_lea.vmem %s0, %s271
        %s273 = smul.u32 8, %s23
        %s274 = ssub.s32 18, %s273
        %p275 = scmp.lt.s32.totalorder %s274, 8
        %s276 = scalar_select %p275, %s274, 8
        %s277 = smul.u32 128, %s276
        %s278 = smul.u32 %s277, 3
        %p279 = scmp.lt.s32.totalorder %s22, 1
        %s280 = scalar_select %p279, %s22, 1
        %p281 = scmp.lt.s32.totalorder %s23, 1
        %s282 = scalar_select %p281, %s23, 1
        %s283 = smul.addr %s282, 6
        %s284 = smul.addr %s280, 12
        %s285 = sadd.s32 %s283, %s284
        %s286 = smul.addr %s285, 8
        %s287 = scalar_lea.vmem %s1, %s286
        %s288 = smul.u32 4, %s23
        %v289 = vld [vmem:[%s272] sm:$0xff]
        %v290 = vld [vmem:[%s272 + $0x8] sm:$0xff]
        %v291 = vld [vmem:[%s272 + $0x18] sm:$0xff]
        %v292 = vld [vmem:[%s272 + $0x20] sm:$0xff]
        %v293 = vld [vmem:[%s272 + $0x30] sm:$0xff]
        %v294 = vld [vmem:[%s272 + $0x38] sm:$0xff]
        %v295 = vld [vmem:[%s272 + $0x48] sm:$0xff]
        %v296 = vld [vmem:[%s272 + $0x50] sm:$0xff]
        %v297 = vld [vmem:[%s272 + $0x60] sm:$0xff]
        %v298 = vld [vmem:[%s272 + $0x68] sm:$0xff]
        %v299 = vld [vmem:[%s272 + $0x78] sm:$0xff]
        %v300 = vld [vmem:[%s272 + $0x80] sm:$0xff]
        %v301 = vld [vmem:[%s272 + $0x90] sm:$0xff]
        %v302 = vld [vmem:[%s272 + $0x98] sm:$0xff]
        %v303 = vld [vmem:[%s272 + $0xa8] sm:$0xff]
        %v304 = vld [vmem:[%s272 + $0xb0] sm:$0xff]
        %vm305 = vcmask 64512
        %306 = vst.msk [vmem:[#allocation2] sm:$0xff] %vm305, %v289
        %307 = vst.msk [vmem:[#allocation2 + $0x8] sm:$0xff] %vm305, %v290
        %308 = vst.msk [vmem:[#allocation2 + $0x10] sm:$0xff] %vm305, %v291
        %309 = vst.msk [vmem:[#allocation2 + $0x18] sm:$0xff] %vm305, %v292
        %310 = vst.msk [vmem:[#allocation2 + $0x20] sm:$0xff] %vm305, %v293
        %311 = vst.msk [vmem:[#allocation2 + $0x28] sm:$0xff] %vm305, %v294
        %312 = vst.msk [vmem:[#allocation2 + $0x30] sm:$0xff] %vm305, %v295
        %313 = vst.msk [vmem:[#allocation2 + $0x38] sm:$0xff] %vm305, %v296
        %314 = vst.msk [vmem:[#allocation2 + $0x40] sm:$0xff] %vm305, %v297
        %315 = vst.msk [vmem:[#allocation2 + $0x48] sm:$0xff] %vm305, %v298
        %316 = vst.msk [vmem:[#allocation2 + $0x50] sm:$0xff] %vm305, %v299
        %317 = vst.msk [vmem:[#allocation2 + $0x58] sm:$0xff] %vm305, %v300
        %318 = vst.msk [vmem:[#allocation2 + $0x60] sm:$0xff] %vm305, %v301
        %319 = vst.msk [vmem:[#allocation2 + $0x68] sm:$0xff] %vm305, %v302
        %320 = vst.msk [vmem:[#allocation2 + $0x70] sm:$0xff] %vm305, %v303
        %321 = vst.msk [vmem:[#allocation2 + $0x78] sm:$0xff] %vm305, %v304
        %v322 = vld [vmem:[%s272 + $0x1] sm:$0xff]
        %v323 = vld [vmem:[%s272 + $0x9] sm:$0xff]
        %v324 = vld [vmem:[%s272 + $0x19] sm:$0xff]
        %v325 = vld [vmem:[%s272 + $0x21] sm:$0xff]
        %v326 = vld [vmem:[%s272 + $0x31] sm:$0xff]
        %v327 = vld [vmem:[%s272 + $0x39] sm:$0xff]
        %v328 = vld [vmem:[%s272 + $0x49] sm:$0xff]
        %v329 = vld [vmem:[%s272 + $0x51] sm:$0xff]
        %v330 = vld [vmem:[%s272 + $0x61] sm:$0xff]
        %v331 = vld [vmem:[%s272 + $0x69] sm:$0xff]
        %v332 = vld [vmem:[%s272 + $0x79] sm:$0xff]
        %v333 = vld [vmem:[%s272 + $0x81] sm:$0xff]
        %v334 = vld [vmem:[%s272 + $0x91] sm:$0xff]
        %v335 = vld [vmem:[%s272 + $0x99] sm:$0xff]
        %v336 = vld [vmem:[%s272 + $0xa9] sm:$0xff]
        %v337 = vld [vmem:[%s272 + $0xb1] sm:$0xff]
        %354 = vrot.lane.b32.xlu0 %v322, 8
        %v355 = vpop.permute.xlu0 %354
        %356 = vrot.lane.b32.xlu0 %v323, 8
        %v357 = vpop.permute.xlu0 %356
        %358 = vrot.lane.b32.xlu0 %v324, 8
        %v359 = vpop.permute.xlu0 %358
        %360 = vrot.lane.b32.xlu0 %v325, 8
        %v361 = vpop.permute.xlu0 %360
        %362 = vrot.lane.b32.xlu0 %v326, 8
        %v363 = vpop.permute.xlu0 %362
        %364 = vrot.lane.b32.xlu0 %v327, 8
        %v365 = vpop.permute.xlu0 %364
        %366 = vrot.lane.b32.xlu0 %v328, 8
        %v367 = vpop.permute.xlu0 %366
        %368 = vrot.lane.b32.xlu0 %v329, 8
        %v369 = vpop.permute.xlu0 %368
        %370 = vrot.lane.b32.xlu0 %v330, 8
        %v371 = vpop.permute.xlu0 %370
        %372 = vrot.lane.b32.xlu0 %v331, 8
        %v373 = vpop.permute.xlu0 %372
        %374 = vrot.lane.b32.xlu0 %v332, 8
        %v375 = vpop.permute.xlu0 %374
        %376 = vrot.lane.b32.xlu0 %v333, 8
        %v377 = vpop.permute.xlu0 %376
        %378 = vrot.lane.b32.xlu0 %v334, 8
        %v379 = vpop.permute.xlu0 %378
        %380 = vrot.lane.b32.xlu0 %v335, 8
        %v381 = vpop.permute.xlu0 %380
        %382 = vrot.lane.b32.xlu0 %v336, 8
        %v383 = vpop.permute.xlu0 %382
        %384 = vrot.lane.b32.xlu0 %v337, 8
        %v385 = vpop.permute.xlu0 %384
        %vm402 = vcmask 130112
        %403 = vst.msk [vmem:[#allocation2] sm:$0xff] %vm402, %v355
        %404 = vst.msk [vmem:[#allocation2 + $0x8] sm:$0xff] %vm402, %v357
        %405 = vst.msk [vmem:[#allocation2 + $0x10] sm:$0xff] %vm402, %v359
        %406 = vst.msk [vmem:[#allocation2 + $0x18] sm:$0xff] %vm402, %v361
        %407 = vst.msk [vmem:[#allocation2 + $0x20] sm:$0xff] %vm402, %v363
        %408 = vst.msk [vmem:[#allocation2 + $0x28] sm:$0xff] %vm402, %v365
        %409 = vst.msk [vmem:[#allocation2 + $0x30] sm:$0xff] %vm402, %v367
        %410 = vst.msk [vmem:[#allocation2 + $0x38] sm:$0xff] %vm402, %v369
        %411 = vst.msk [vmem:[#allocation2 + $0x40] sm:$0xff] %vm402, %v371
        %412 = vst.msk [vmem:[#allocation2 + $0x48] sm:$0xff] %vm402, %v373
        %413 = vst.msk [vmem:[#allocation2 + $0x50] sm:$0xff] %vm402, %v375
        %414 = vst.msk [vmem:[#allocation2 + $0x58] sm:$0xff] %vm402, %v377
        %415 = vst.msk [vmem:[#allocation2 + $0x60] sm:$0xff] %vm402, %v379
        %416 = vst.msk [vmem:[#allocation2 + $0x68] sm:$0xff] %vm402, %v381
        %417 = vst.msk [vmem:[#allocation2 + $0x70] sm:$0xff] %vm402, %v383
        %418 = vst.msk [vmem:[#allocation2 + $0x78] sm:$0xff] %vm402, %v385
        %v419 = vld [vmem:[%s272 + $0x2] sm:$0xff]
        %v420 = vld [vmem:[%s272 + $0xa] sm:$0xff]
        %v421 = vld [vmem:[%s272 + $0x1a] sm:$0xff]
        %v422 = vld [vmem:[%s272 + $0x22] sm:$0xff]
        %v423 = vld [vmem:[%s272 + $0x32] sm:$0xff]
        %v424 = vld [vmem:[%s272 + $0x3a] sm:$0xff]
        %v425 = vld [vmem:[%s272 + $0x4a] sm:$0xff]
        %v426 = vld [vmem:[%s272 + $0x52] sm:$0xff]
        %v427 = vld [vmem:[%s272 + $0x62] sm:$0xff]
        %v428 = vld [vmem:[%s272 + $0x6a] sm:$0xff]
        %v429 = vld [vmem:[%s272 + $0x7a] sm:$0xff]
        %v430 = vld [vmem:[%s272 + $0x82] sm:$0xff]
        %v431 = vld [vmem:[%s272 + $0x92] sm:$0xff]
        %v432 = vld [vmem:[%s272 + $0x9a] sm:$0xff]
        %v433 = vld [vmem:[%s272 + $0xaa] sm:$0xff]
        %v434 = vld [vmem:[%s272 + $0xb2] sm:$0xff]
        %451 = vrot.lane.b32.xlu0 %v419, 16
        %v452 = vpop.permute.xlu0 %451
        %453 = vrot.lane.b32.xlu0 %v420, 16
        %v454 = vpop.permute.xlu0 %453
        %455 = vrot.lane.b32.xlu0 %v421, 16
        %v456 = vpop.permute.xlu0 %455
        %457 = vrot.lane.b32.xlu0 %v422, 16
        %v458 = vpop.permute.xlu0 %457
        %459 = vrot.lane.b32.xlu0 %v423, 16
        %v460 = vpop.permute.xlu0 %459
        %461 = vrot.lane.b32.xlu0 %v424, 16
        %v462 = vpop.permute.xlu0 %461
        %463 = vrot.lane.b32.xlu0 %v425, 16
        %v464 = vpop.permute.xlu0 %463
        %465 = vrot.lane.b32.xlu0 %v426, 16
        %v466 = vpop.permute.xlu0 %465
        %467 = vrot.lane.b32.xlu0 %v427, 16
        %v468 = vpop.permute.xlu0 %467
        %469 = vrot.lane.b32.xlu0 %v428, 16
        %v470 = vpop.permute.xlu0 %469
        %471 = vrot.lane.b32.xlu0 %v429, 16
        %v472 = vpop.permute.xlu0 %471
        %473 = vrot.lane.b32.xlu0 %v430, 16
        %v474 = vpop.permute.xlu0 %473
        %475 = vrot.lane.b32.xlu0 %v431, 16
        %v476 = vpop.permute.xlu0 %475
        %477 = vrot.lane.b32.xlu0 %v432, 16
        %v478 = vpop.permute.xlu0 %477
        %479 = vrot.lane.b32.xlu0 %v433, 16
        %v480 = vpop.permute.xlu0 %479
        %481 = vrot.lane.b32.xlu0 %v434, 16
        %v482 = vpop.permute.xlu0 %481
        %vm499 = vcmask 195712
        %500 = vst.msk [vmem:[#allocation2] sm:$0xff] %vm499, %v452
        %501 = vst.msk [vmem:[#allocation2 + $0x8] sm:$0xff] %vm499, %v454
        %502 = vst.msk [vmem:[#allocation2 + $0x10] sm:$0xff] %vm499, %v456
        %503 = vst.msk [vmem:[#allocation2 + $0x18] sm:$0xff] %vm499, %v458
        %504 = vst.msk [vmem:[#allocation2 + $0x20] sm:$0xff] %vm499, %v460
        %505 = vst.msk [vmem:[#allocation2 + $0x28] sm:$0xff] %vm499, %v462
        %506 = vst.msk [vmem:[#allocation2 + $0x30] sm:$0xff] %vm499, %v464
        %507 = vst.msk [vmem:[#allocation2 + $0x38] sm:$0xff] %vm499, %v466
        %508 = vst.msk [vmem:[#allocation2 + $0x40] sm:$0xff] %vm499, %v468
        %509 = vst.msk [vmem:[#allocation2 + $0x48] sm:$0xff] %vm499, %v470
        %510 = vst.msk [vmem:[#allocation2 + $0x50] sm:$0xff] %vm499, %v472
        %511 = vst.msk [vmem:[#allocation2 + $0x58] sm:$0xff] %vm499, %v474
        %512 = vst.msk [vmem:[#allocation2 + $0x60] sm:$0xff] %vm499, %v476
        %513 = vst.msk [vmem:[#allocation2 + $0x68] sm:$0xff] %vm499, %v478
        %514 = vst.msk [vmem:[#allocation2 + $0x70] sm:$0xff] %vm499, %v480
        %515 = vst.msk [vmem:[#allocation2 + $0x78] sm:$0xff] %vm499, %v482
        %s516 = scalar_lea.vmem %s272, 24
        %v517 = vld [vmem:[%s516] sm:$0xff]
        %v518 = vld [vmem:[%s516 + $0x8] sm:$0xff]
        %v519 = vld [vmem:[%s516 + $0x18] sm:$0xff]
        %v520 = vld [vmem:[%s516 + $0x20] sm:$0xff]
        %v521 = vld [vmem:[%s516 + $0x30] sm:$0xff]
        %v522 = vld [vmem:[%s516 + $0x38] sm:$0xff]
        %v523 = vld [vmem:[%s516 + $0x48] sm:$0xff]
        %v524 = vld [vmem:[%s516 + $0x50] sm:$0xff]
        %v525 = vld [vmem:[%s516 + $0x60] sm:$0xff]
        %v526 = vld [vmem:[%s516 + $0x68] sm:$0xff]
        %v527 = vld [vmem:[%s516 + $0x78] sm:$0xff]
        %v528 = vld [vmem:[%s516 + $0x80] sm:$0xff]
        %v529 = vld [vmem:[%s516 + $0x90] sm:$0xff]
        %v530 = vld [vmem:[%s516 + $0x98] sm:$0xff]
        %545 = vrot.lane.b32.xlu0 %v517, 24
        %v546 = vpop.permute.xlu0 %545
        %547 = vrot.lane.b32.xlu0 %v518, 24
        %v548 = vpop.permute.xlu0 %547
        %549 = vrot.lane.b32.xlu0 %v519, 24
        %v550 = vpop.permute.xlu0 %549
        %551 = vrot.lane.b32.xlu0 %v520, 24
        %v552 = vpop.permute.xlu0 %551
        %553 = vrot.lane.b32.xlu0 %v521, 24
        %v554 = vpop.permute.xlu0 %553
        %555 = vrot.lane.b32.xlu0 %v522, 24
        %v556 = vpop.permute.xlu0 %555
        %557 = vrot.lane.b32.xlu0 %v523, 24
        %v558 = vpop.permute.xlu0 %557
        %559 = vrot.lane.b32.xlu0 %v524, 24
        %v560 = vpop.permute.xlu0 %559
        %561 = vrot.lane.b32.xlu0 %v525, 24
        %v562 = vpop.permute.xlu0 %561
        %563 = vrot.lane.b32.xlu0 %v526, 24
        %v564 = vpop.permute.xlu0 %563
        %565 = vrot.lane.b32.xlu0 %v527, 24
        %v566 = vpop.permute.xlu0 %565
        %567 = vrot.lane.b32.xlu0 %v528, 24
        %v568 = vpop.permute.xlu0 %567
        %569 = vrot.lane.b32.xlu0 %v529, 24
        %v570 = vpop.permute.xlu0 %569
        %571 = vrot.lane.b32.xlu0 %v530, 24
        %v572 = vpop.permute.xlu0 %571
        %vm587 = vcmask 261312
        %588 = vst.msk [vmem:[#allocation2] sm:$0xff] %vm587, %v546
        %589 = vst.msk [vmem:[#allocation2 + $0x8] sm:$0xff] %vm587, %v548
        %590 = vst.msk [vmem:[#allocation2 + $0x10] sm:$0xff] %vm587, %v550
        %591 = vst.msk [vmem:[#allocation2 + $0x18] sm:$0xff] %vm587, %v552
        %592 = vst.msk [vmem:[#allocation2 + $0x20] sm:$0xff] %vm587, %v554
        %593 = vst.msk [vmem:[#allocation2 + $0x28] sm:$0xff] %vm587, %v556
        %594 = vst.msk [vmem:[#allocation2 + $0x30] sm:$0xff] %vm587, %v558
        %595 = vst.msk [vmem:[#allocation2 + $0x38] sm:$0xff] %vm587, %v560
        %596 = vst.msk [vmem:[#allocation2 + $0x40] sm:$0xff] %vm587, %v562
        %597 = vst.msk [vmem:[#allocation2 + $0x48] sm:$0xff] %vm587, %v564
        %598 = vst.msk [vmem:[#allocation2 + $0x50] sm:$0xff] %vm587, %v566
        %599 = vst.msk [vmem:[#allocation2 + $0x58] sm:$0xff] %vm587, %v568
        %600 = vst.msk [vmem:[#allocation2 + $0x60] sm:$0xff] %vm587, %v570
        %601 = vst.msk [vmem:[#allocation2 + $0x68] sm:$0xff] %vm587, %v572
        %v602 = vld [vmem:[%s287] sm:$0xff]
        %v603 = vld [vmem:[%s287 + $0x8] sm:$0xff]
        %606 = vrot.lane.b32.xlu0 %v602, 24
        %v607 = vpop.permute.xlu0 %606
        %608 = vrot.lane.b32.xlu0 %v603, 24
        %v609 = vpop.permute.xlu0 %608
        %612 = vst.msk [vmem:[#allocation2 + $0x70] sm:$0xff] %vm587, %v607
        %613 = vst.msk [vmem:[#allocation2 + $0x78] sm:$0xff] %vm587, %v609
        %v614 = vld [vmem:[%s516 + $0x1] sm:$0xff]
        %v615 = vld [vmem:[%s516 + $0x9] sm:$0xff]
        %v616 = vld [vmem:[%s516 + $0x19] sm:$0xff]
        %v617 = vld [vmem:[%s516 + $0x21] sm:$0xff]
        %v618 = vld [vmem:[%s516 + $0x31] sm:$0xff]
        %v619 = vld [vmem:[%s516 + $0x39] sm:$0xff]
        %v620 = vld [vmem:[%s516 + $0x49] sm:$0xff]
        %v621 = vld [vmem:[%s516 + $0x51] sm:$0xff]
        %v622 = vld [vmem:[%s516 + $0x61] sm:$0xff]
        %v623 = vld [vmem:[%s516 + $0x69] sm:$0xff]
        %v624 = vld [vmem:[%s516 + $0x79] sm:$0xff]
        %v625 = vld [vmem:[%s516 + $0x81] sm:$0xff]
        %v626 = vld [vmem:[%s516 + $0x91] sm:$0xff]
        %v627 = vld [vmem:[%s516 + $0x99] sm:$0xff]
        %642 = vrot.lane.b32.xlu0 %v614, 32
        %v643 = vpop.permute.xlu0 %642
        %644 = vrot.lane.b32.xlu0 %v615, 32
        %v645 = vpop.permute.xlu0 %644
        %646 = vrot.lane.b32.xlu0 %v616, 32
        %v647 = vpop.permute.xlu0 %646
        %648 = vrot.lane.b32.xlu0 %v617, 32
        %v649 = vpop.permute.xlu0 %648
        %650 = vrot.lane.b32.xlu0 %v618, 32
        %v651 = vpop.permute.xlu0 %650
        %652 = vrot.lane.b32.xlu0 %v619, 32
        %v653 = vpop.permute.xlu0 %652
        %654 = vrot.lane.b32.xlu0 %v620, 32
        %v655 = vpop.permute.xlu0 %654
        %656 = vrot.lane.b32.xlu0 %v621, 32
        %v657 = vpop.permute.xlu0 %656
        %658 = vrot.lane.b32.xlu0 %v622, 32
        %v659 = vpop.permute.xlu0 %658
        %660 = vrot.lane.b32.xlu0 %v623, 32
        %v661 = vpop.permute.xlu0 %660
        %662 = vrot.lane.b32.xlu0 %v624, 32
        %v663 = vpop.permute.xlu0 %662
        %664 = vrot.lane.b32.xlu0 %v625, 32
        %v665 = vpop.permute.xlu0 %664
        %666 = vrot.lane.b32.xlu0 %v626, 32
        %v667 = vpop.permute.xlu0 %666
        %668 = vrot.lane.b32.xlu0 %v627, 32
        %v669 = vpop.permute.xlu0 %668
        %vm684 = vcmask 326912
        %685 = vst.msk [vmem:[#allocation2] sm:$0xff] %vm684, %v643
        %686 = vst.msk [vmem:[#allocation2 + $0x8] sm:$0xff] %vm684, %v645
        %687 = vst.msk [vmem:[#allocation2 + $0x10] sm:$0xff] %vm684, %v647
        %688 = vst.msk [vmem:[#allocation2 + $0x18] sm:$0xff] %vm684, %v649
        %689 = vst.msk [vmem:[#allocation2 + $0x20] sm:$0xff] %vm684, %v651
        %690 = vst.msk [vmem:[#allocation2 + $0x28] sm:$0xff] %vm684, %v653
        %691 = vst.msk [vmem:[#allocation2 + $0x30] sm:$0xff] %vm684, %v655
        %692 = vst.msk [vmem:[#allocation2 + $0x38] sm:$0xff] %vm684, %v657
        %693 = vst.msk [vmem:[#allocation2 + $0x40] sm:$0xff] %vm684, %v659
        %694 = vst.msk [vmem:[#allocation2 + $0x48] sm:$0xff] %vm684, %v661
        %695 = vst.msk [vmem:[#allocation2 + $0x50] sm:$0xff] %vm684, %v663
        %696 = vst.msk [vmem:[#allocation2 + $0x58] sm:$0xff] %vm684, %v665
        %697 = vst.msk [vmem:[#allocation2 + $0x60] sm:$0xff] %vm684, %v667
        %698 = vst.msk [vmem:[#allocation2 + $0x68] sm:$0xff] %vm684, %v669
        %v699 = vld [vmem:[%s287 + $0x1] sm:$0xff]
        %v700 = vld [vmem:[%s287 + $0x9] sm:$0xff]
        %703 = vrot.lane.b32.xlu0 %v699, 32
        %v704 = vpop.permute.xlu0 %703
        %705 = vrot.lane.b32.xlu0 %v700, 32
        %v706 = vpop.permute.xlu0 %705
        %709 = vst.msk [vmem:[#allocation2 + $0x70] sm:$0xff] %vm684, %v704
        %710 = vst.msk [vmem:[#allocation2 + $0x78] sm:$0xff] %vm684, %v706
        %v711 = vld [vmem:[%s516 + $0x2] sm:$0xff]
        %v712 = vld [vmem:[%s516 + $0xa] sm:$0xff]
        %v713 = vld [vmem:[%s516 + $0x1a] sm:$0xff]
        %v714 = vld [vmem:[%s516 + $0x22] sm:$0xff]
        %v715 = vld [vmem:[%s516 + $0x32] sm:$0xff]
        %v716 = vld [vmem:[%s516 + $0x3a] sm:$0xff]
        %v717 = vld [vmem:[%s516 + $0x4a] sm:$0xff]
        %v718 = vld [vmem:[%s516 + $0x52] sm:$0xff]
        %v719 = vld [vmem:[%s516 + $0x62] sm:$0xff]
        %v720 = vld [vmem:[%s516 + $0x6a] sm:$0xff]
        %v721 = vld [vmem:[%s516 + $0x7a] sm:$0xff]
        %v722 = vld [vmem:[%s516 + $0x82] sm:$0xff]
        %v723 = vld [vmem:[%s516 + $0x92] sm:$0xff]
        %v724 = vld [vmem:[%s516 + $0x9a] sm:$0xff]
        %739 = vrot.lane.b32.xlu0 %v711, 40
        %v740 = vpop.permute.xlu0 %739
        %741 = vrot.lane.b32.xlu0 %v712, 40
        %v742 = vpop.permute.xlu0 %741
        %743 = vrot.lane.b32.xlu0 %v713, 40
        %v744 = vpop.permute.xlu0 %743
        %745 = vrot.lane.b32.xlu0 %v714, 40
        %v746 = vpop.permute.xlu0 %745
        %747 = vrot.lane.b32.xlu0 %v715, 40
        %v748 = vpop.permute.xlu0 %747
        %749 = vrot.lane.b32.xlu0 %v716, 40
        %v750 = vpop.permute.xlu0 %749
        %751 = vrot.lane.b32.xlu0 %v717, 40
        %v752 = vpop.permute.xlu0 %751
        %753 = vrot.lane.b32.xlu0 %v718, 40
        %v754 = vpop.permute.xlu0 %753
        %755 = vrot.lane.b32.xlu0 %v719, 40
        %v756 = vpop.permute.xlu0 %755
        %757 = vrot.lane.b32.xlu0 %v720, 40
        %v758 = vpop.permute.xlu0 %757
        %759 = vrot.lane.b32.xlu0 %v721, 40
        %v760 = vpop.permute.xlu0 %759
        %761 = vrot.lane.b32.xlu0 %v722, 40
        %v762 = vpop.permute.xlu0 %761
        %763 = vrot.lane.b32.xlu0 %v723, 40
        %v764 = vpop.permute.xlu0 %763
        %765 = vrot.lane.b32.xlu0 %v724, 40
        %v766 = vpop.permute.xlu0 %765
        %vm781 = vcmask 392512
        %782 = vst.msk [vmem:[#allocation2] sm:$0xff] %vm781, %v740
        %783 = vst.msk [vmem:[#allocation2 + $0x8] sm:$0xff] %vm781, %v742
        %784 = vst.msk [vmem:[#allocation2 + $0x10] sm:$0xff] %vm781, %v744
        %785 = vst.msk [vmem:[#allocation2 + $0x18] sm:$0xff] %vm781, %v746
        %786 = vst.msk [vmem:[#allocation2 + $0x20] sm:$0xff] %vm781, %v748
        %787 = vst.msk [vmem:[#allocation2 + $0x28] sm:$0xff] %vm781, %v750
        %788 = vst.msk [vmem:[#allocation2 + $0x30] sm:$0xff] %vm781, %v752
        %789 = vst.msk [vmem:[#allocation2 + $0x38] sm:$0xff] %vm781, %v754
        %790 = vst.msk [vmem:[#allocation2 + $0x40] sm:$0xff] %vm781, %v756
        %791 = vst.msk [vmem:[#allocation2 + $0x48] sm:$0xff] %vm781, %v758
        %792 = vst.msk [vmem:[#allocation2 + $0x50] sm:$0xff] %vm781, %v760
        %793 = vst.msk [vmem:[#allocation2 + $0x58] sm:$0xff] %vm781, %v762
        %794 = vst.msk [vmem:[#allocation2 + $0x60] sm:$0xff] %vm781, %v764
        %795 = vst.msk [vmem:[#allocation2 + $0x68] sm:$0xff] %vm781, %v766
        %v796 = vld [vmem:[%s287 + $0x2] sm:$0xff]
        %v797 = vld [vmem:[%s287 + $0xa] sm:$0xff]
        %800 = vrot.lane.b32.xlu0 %v796, 40
        %v801 = vpop.permute.xlu0 %800
        %802 = vrot.lane.b32.xlu0 %v797, 40
        %v803 = vpop.permute.xlu0 %802
        %806 = vst.msk [vmem:[#allocation2 + $0x70] sm:$0xff] %vm781, %v801
        %807 = vst.msk [vmem:[#allocation2 + $0x78] sm:$0xff] %vm781, %v803
        %s808 = scalar_lea.vmem %s272, 48
        %v809 = vld [vmem:[%s808] sm:$0xff]
        %v810 = vld [vmem:[%s808 + $0x8] sm:$0xff]
        %v811 = vld [vmem:[%s808 + $0x18] sm:$0xff]
        %v812 = vld [vmem:[%s808 + $0x20] sm:$0xff]
        %v813 = vld [vmem:[%s808 + $0x30] sm:$0xff]
        %v814 = vld [vmem:[%s808 + $0x38] sm:$0xff]
        %v815 = vld [vmem:[%s808 + $0x48] sm:$0xff]
        %v816 = vld [vmem:[%s808 + $0x50] sm:$0xff]
        %v817 = vld [vmem:[%s808 + $0x60] sm:$0xff]
        %v818 = vld [vmem:[%s808 + $0x68] sm:$0xff]
        %v819 = vld [vmem:[%s808 + $0x78] sm:$0xff]
        %v820 = vld [vmem:[%s808 + $0x80] sm:$0xff]
        %833 = vrot.lane.b32.xlu0 %v809, 48
        %v834 = vpop.permute.xlu0 %833
        %835 = vrot.lane.b32.xlu0 %v810, 48
        %v836 = vpop.permute.xlu0 %835
        %837 = vrot.lane.b32.xlu0 %v811, 48
        %v838 = vpop.permute.xlu0 %837
        %839 = vrot.lane.b32.xlu0 %v812, 48
        %v840 = vpop.permute.xlu0 %839
        %841 = vrot.lane.b32.xlu0 %v813, 48
        %v842 = vpop.permute.xlu0 %841
        %843 = vrot.lane.b32.xlu0 %v814, 48
        %v844 = vpop.permute.xlu0 %843
        %845 = vrot.lane.b32.xlu0 %v815, 48
        %v846 = vpop.permute.xlu0 %845
        %847 = vrot.lane.b32.xlu0 %v816, 48
        %v848 = vpop.permute.xlu0 %847
        %849 = vrot.lane.b32.xlu0 %v817, 48
        %v850 = vpop.permute.xlu0 %849
        %851 = vrot.lane.b32.xlu0 %v818, 48
        %v852 = vpop.permute.xlu0 %851
        %853 = vrot.lane.b32.xlu0 %v819, 48
        %v854 = vpop.permute.xlu0 %853
        %855 = vrot.lane.b32.xlu0 %v820, 48
        %v856 = vpop.permute.xlu0 %855
        %vm869 = vcmask 458112
        %870 = vst.msk [vmem:[#allocation2] sm:$0xff] %vm869, %v834
        %871 = vst.msk [vmem:[#allocation2 + $0x8] sm:$0xff] %vm869, %v836
        %872 = vst.msk [vmem:[#allocation2 + $0x10] sm:$0xff] %vm869, %v838
        %873 = vst.msk [vmem:[#allocation2 + $0x18] sm:$0xff] %vm869, %v840
        %874 = vst.msk [vmem:[#allocation2 + $0x20] sm:$0xff] %vm869, %v842
        %875 = vst.msk [vmem:[#allocation2 + $0x28] sm:$0xff] %vm869, %v844
        %876 = vst.msk [vmem:[#allocation2 + $0x30] sm:$0xff] %vm869, %v846
        %877 = vst.msk [vmem:[#allocation2 + $0x38] sm:$0xff] %vm869, %v848
        %878 = vst.msk [vmem:[#allocation2 + $0x40] sm:$0xff] %vm869, %v850
        %879 = vst.msk [vmem:[#allocation2 + $0x48] sm:$0xff] %vm869, %v852
        %880 = vst.msk [vmem:[#allocation2 + $0x50] sm:$0xff] %vm869, %v854
        %881 = vst.msk [vmem:[#allocation2 + $0x58] sm:$0xff] %vm869, %v856
        %v882 = vld [vmem:[%s287] sm:$0xff]
        %v883 = vld [vmem:[%s287 + $0x8] sm:$0xff]
        %v884 = vld [vmem:[%s287 + $0x18] sm:$0xff]
        %v885 = vld [vmem:[%s287 + $0x20] sm:$0xff]
        %890 = vrot.lane.b32.xlu0 %v882, 48
        %v891 = vpop.permute.xlu0 %890
        %892 = vrot.lane.b32.xlu0 %v883, 48
        %v893 = vpop.permute.xlu0 %892
        %894 = vrot.lane.b32.xlu0 %v884, 48
        %v895 = vpop.permute.xlu0 %894
        %896 = vrot.lane.b32.xlu0 %v885, 48
        %v897 = vpop.permute.xlu0 %896
        %902 = vst.msk [vmem:[#allocation2 + $0x60] sm:$0xff] %vm869, %v891
        %903 = vst.msk [vmem:[#allocation2 + $0x68] sm:$0xff] %vm869, %v893
        %904 = vst.msk [vmem:[#allocation2 + $0x70] sm:$0xff] %vm869, %v895
        %905 = vst.msk [vmem:[#allocation2 + $0x78] sm:$0xff] %vm869, %v897
        %v906 = vld [vmem:[%s808 + $0x1] sm:$0xff]
        %v907 = vld [vmem:[%s808 + $0x9] sm:$0xff]
        %v908 = vld [vmem:[%s808 + $0x19] sm:$0xff]
        %v909 = vld [vmem:[%s808 + $0x21] sm:$0xff]
        %v910 = vld [vmem:[%s808 + $0x31] sm:$0xff]
        %v911 = vld [vmem:[%s808 + $0x39] sm:$0xff]
        %v912 = vld [vmem:[%s808 + $0x49] sm:$0xff]
        %v913 = vld [vmem:[%s808 + $0x51] sm:$0xff]
        %v914 = vld [vmem:[%s808 + $0x61] sm:$0xff]
        %v915 = vld [vmem:[%s808 + $0x69] sm:$0xff]
        %v916 = vld [vmem:[%s808 + $0x79] sm:$0xff]
        %v917 = vld [vmem:[%s808 + $0x81] sm:$0xff]
        %930 = vrot.lane.b32.xlu0 %v906, 56
        %v931 = vpop.permute.xlu0 %930
        %932 = vrot.lane.b32.xlu0 %v907, 56
        %v933 = vpop.permute.xlu0 %932
        %934 = vrot.lane.b32.xlu0 %v908, 56
        %v935 = vpop.permute.xlu0 %934
        %936 = vrot.lane.b32.xlu0 %v909, 56
        %v937 = vpop.permute.xlu0 %936
        %938 = vrot.lane.b32.xlu0 %v910, 56
        %v939 = vpop.permute.xlu0 %938
        %940 = vrot.lane.b32.xlu0 %v911, 56
        %v941 = vpop.permute.xlu0 %940
        %942 = vrot.lane.b32.xlu0 %v912, 56
        %v943 = vpop.permute.xlu0 %942
        %944 = vrot.lane.b32.xlu0 %v913, 56
        %v945 = vpop.permute.xlu0 %944
        %946 = vrot.lane.b32.xlu0 %v914, 56
        %v947 = vpop.permute.xlu0 %946
        %948 = vrot.lane.b32.xlu0 %v915, 56
        %v949 = vpop.permute.xlu0 %948
        %950 = vrot.lane.b32.xlu0 %v916, 56
        %v951 = vpop.permute.xlu0 %950
        %952 = vrot.lane.b32.xlu0 %v917, 56
        %v953 = vpop.permute.xlu0 %952
        %vm966 = vcmask 523712
        %967 = vst.msk [vmem:[#allocation2] sm:$0xff] %vm966, %v931
        %968 = vst.msk [vmem:[#allocation2 + $0x8] sm:$0xff] %vm966, %v933
        %969 = vst.msk [vmem:[#allocation2 + $0x10] sm:$0xff] %vm966, %v935
        %970 = vst.msk [vmem:[#allocation2 + $0x18] sm:$0xff] %vm966, %v937
        %971 = vst.msk [vmem:[#allocation2 + $0x20] sm:$0xff] %vm966, %v939
        %972 = vst.msk [vmem:[#allocation2 + $0x28] sm:$0xff] %vm966, %v941
        %973 = vst.msk [vmem:[#allocation2 + $0x30] sm:$0xff] %vm966, %v943
        %974 = vst.msk [vmem:[#allocation2 + $0x38] sm:$0xff] %vm966, %v945
        %975 = vst.msk [vmem:[#allocation2 + $0x40] sm:$0xff] %vm966, %v947
        %976 = vst.msk [vmem:[#allocation2 + $0x48] sm:$0xff] %vm966, %v949
        %977 = vst.msk [vmem:[#allocation2 + $0x50] sm:$0xff] %vm966, %v951
        %978 = vst.msk [vmem:[#allocation2 + $0x58] sm:$0xff] %vm966, %v953
        %v979 = vld [vmem:[%s287 + $0x1] sm:$0xff]
        %v980 = vld [vmem:[%s287 + $0x9] sm:$0xff]
        %v981 = vld [vmem:[%s287 + $0x19] sm:$0xff]
        %v982 = vld [vmem:[%s287 + $0x21] sm:$0xff]
        %987 = vrot.lane.b32.xlu0 %v979, 56
        %v988 = vpop.permute.xlu0 %987
        %989 = vrot.lane.b32.xlu0 %v980, 56
        %v990 = vpop.permute.xlu0 %989
        %991 = vrot.lane.b32.xlu0 %v981, 56
        %v992 = vpop.permute.xlu0 %991
        %993 = vrot.lane.b32.xlu0 %v982, 56
        %v994 = vpop.permute.xlu0 %993
        %999 = vst.msk [vmem:[#allocation2 + $0x60] sm:$0xff] %vm966, %v988
        %1000 = vst.msk [vmem:[#allocation2 + $0x68] sm:$0xff] %vm966, %v990
        %1001 = vst.msk [vmem:[#allocation2 + $0x70] sm:$0xff] %vm966, %v992
        %1002 = vst.msk [vmem:[#allocation2 + $0x78] sm:$0xff] %vm966, %v994
        %v1003 = vld [vmem:[%s808 + $0x2] sm:$0xff]
        %v1004 = vld [vmem:[%s808 + $0xa] sm:$0xff]
        %v1005 = vld [vmem:[%s808 + $0x1a] sm:$0xff]
        %v1006 = vld [vmem:[%s808 + $0x22] sm:$0xff]
        %v1007 = vld [vmem:[%s808 + $0x32] sm:$0xff]
        %v1008 = vld [vmem:[%s808 + $0x3a] sm:$0xff]
        %v1009 = vld [vmem:[%s808 + $0x4a] sm:$0xff]
        %v1010 = vld [vmem:[%s808 + $0x52] sm:$0xff]
        %v1011 = vld [vmem:[%s808 + $0x62] sm:$0xff]
        %v1012 = vld [vmem:[%s808 + $0x6a] sm:$0xff]
        %v1013 = vld [vmem:[%s808 + $0x7a] sm:$0xff]
        %v1014 = vld [vmem:[%s808 + $0x82] sm:$0xff]
        %1027 = vrot.lane.b32.xlu0 %v1003, 64
        %v1028 = vpop.permute.xlu0 %1027
        %1029 = vrot.lane.b32.xlu0 %v1004, 64
        %v1030 = vpop.permute.xlu0 %1029
        %1031 = vrot.lane.b32.xlu0 %v1005, 64
        %v1032 = vpop.permute.xlu0 %1031
        %1033 = vrot.lane.b32.xlu0 %v1006, 64
        %v1034 = vpop.permute.xlu0 %1033
        %1035 = vrot.lane.b32.xlu0 %v1007, 64
        %v1036 = vpop.permute.xlu0 %1035
        %1037 = vrot.lane.b32.xlu0 %v1008, 64
        %v1038 = vpop.permute.xlu0 %1037
        %1039 = vrot.lane.b32.xlu0 %v1009, 64
        %v1040 = vpop.permute.xlu0 %1039
        %1041 = vrot.lane.b32.xlu0 %v1010, 64
        %v1042 = vpop.permute.xlu0 %1041
        %1043 = vrot.lane.b32.xlu0 %v1011, 64
        %v1044 = vpop.permute.xlu0 %1043
        %1045 = vrot.lane.b32.xlu0 %v1012, 64
        %v1046 = vpop.permute.xlu0 %1045
        %1047 = vrot.lane.b32.xlu0 %v1013, 64
        %v1048 = vpop.permute.xlu0 %1047
        %1049 = vrot.lane.b32.xlu0 %v1014, 64
        %v1050 = vpop.permute.xlu0 %1049
        %vm1063 = vcmask 589312
        %1064 = vst.msk [vmem:[#allocation2] sm:$0xff] %vm1063, %v1028
        %1065 = vst.msk [vmem:[#allocation2 + $0x8] sm:$0xff] %vm1063, %v1030
        %1066 = vst.msk [vmem:[#allocation2 + $0x10] sm:$0xff] %vm1063, %v1032
        %1067 = vst.msk [vmem:[#allocation2 + $0x18] sm:$0xff] %vm1063, %v1034
        %1068 = vst.msk [vmem:[#allocation2 + $0x20] sm:$0xff] %vm1063, %v1036
        %1069 = vst.msk [vmem:[#allocation2 + $0x28] sm:$0xff] %vm1063, %v1038
        %1070 = vst.msk [vmem:[#allocation2 + $0x30] sm:$0xff] %vm1063, %v1040
        %1071 = vst.msk [vmem:[#allocation2 + $0x38] sm:$0xff] %vm1063, %v1042
        %1072 = vst.msk [vmem:[#allocation2 + $0x40] sm:$0xff] %vm1063, %v1044
        %1073 = vst.msk [vmem:[#allocation2 + $0x48] sm:$0xff] %vm1063, %v1046
        %1074 = vst.msk [vmem:[#allocation2 + $0x50] sm:$0xff] %vm1063, %v1048
        %1075 = vst.msk [vmem:[#allocation2 + $0x58] sm:$0xff] %vm1063, %v1050
        %v1076 = vld [vmem:[%s287 + $0x2] sm:$0xff]
        %v1077 = vld [vmem:[%s287 + $0xa] sm:$0xff]
        %v1078 = vld [vmem:[%s287 + $0x1a] sm:$0xff]
        %v1079 = vld [vmem:[%s287 + $0x22] sm:$0xff]
        %1084 = vrot.lane.b32.xlu0 %v1076, 64
        %v1085 = vpop.permute.xlu0 %1084
        %1086 = vrot.lane.b32.xlu0 %v1077, 64
        %v1087 = vpop.permute.xlu0 %1086
        %1088 = vrot.lane.b32.xlu0 %v1078, 64
        %v1089 = vpop.permute.xlu0 %1088
        %1090 = vrot.lane.b32.xlu0 %v1079, 64
        %v1091 = vpop.permute.xlu0 %1090
        %1096 = vst.msk [vmem:[#allocation2 + $0x60] sm:$0xff] %vm1063, %v1085
        %1097 = vst.msk [vmem:[#allocation2 + $0x68] sm:$0xff] %vm1063, %v1087
        %1098 = vst.msk [vmem:[#allocation2 + $0x70] sm:$0xff] %vm1063, %v1089
        %1099 = vst.msk [vmem:[#allocation2 + $0x78] sm:$0xff] %vm1063, %v1091
        %v1100 = vld [vmem:[#allocation2] sm:$0xff]
        %v1101 = vld [vmem:[#allocation2 + $0x8] sm:$0xff]
        %v1102 = vld [vmem:[#allocation2 + $0x10] sm:$0xff]
        %v1103 = vld [vmem:[#allocation2 + $0x18] sm:$0xff]
        %v1104 = vld [vmem:[#allocation2 + $0x20] sm:$0xff]
        %v1105 = vld [vmem:[#allocation2 + $0x28] sm:$0xff]
        %v1106 = vld [vmem:[#allocation2 + $0x30] sm:$0xff]
        %v1107 = vld [vmem:[#allocation2 + $0x38] sm:$0xff]
        %v1108 = vld [vmem:[#allocation2 + $0x40] sm:$0xff]
        %v1109 = vld [vmem:[#allocation2 + $0x48] sm:$0xff]
        %v1110 = vld [vmem:[#allocation2 + $0x50] sm:$0xff]
        %v1111 = vld [vmem:[#allocation2 + $0x58] sm:$0xff]
        %v1112 = vld [vmem:[#allocation2 + $0x60] sm:$0xff]
        %v1113 = vld [vmem:[#allocation2 + $0x68] sm:$0xff]
        %v1114 = vld [vmem:[#allocation2 + $0x70] sm:$0xff]
        %v1115 = vld [vmem:[#allocation2 + $0x78] sm:$0xff]
        %v1116 = vld [vmem:[%s2] sm:$0xff]
        %v1117 = vld [vmem:[%s2 + $0x8] sm:$0xff]
        %v1118 = vld [vmem:[%s2 + $0x10] sm:$0xff]
        %v1119 = vld [vmem:[%s2 + $0x18] sm:$0xff]
        %v1120 = vld [vmem:[%s2 + $0x20] sm:$0xff]
        %v1121 = vld [vmem:[%s2 + $0x28] sm:$0xff]
        %v1122 = vld [vmem:[%s2 + $0x30] sm:$0xff]
        %v1123 = vld [vmem:[%s2 + $0x38] sm:$0xff]
        %v1124 = vld [vmem:[%s2 + $0x40] sm:$0xff]
        %vm1125 = vcmask 588800
        %v1127 = vsel %vm1125, %v1100, 0
        %v1130 = vsel %vm1125, %v1101, 0
        %v1133 = vsel %vm1125, %v1102, 0
        %v1136 = vsel %vm1125, %v1103, 0
        %v1139 = vsel %vm1125, %v1104, 0
        %v1142 = vsel %vm1125, %v1105, 0
        %v1145 = vsel %vm1125, %v1106, 0
        %v1148 = vsel %vm1125, %v1107, 0
        %v1151 = vsel %vm1125, %v1108, 0
        %v1154 = vsel %vm1125, %v1109, 0
        %v1157 = vsel %vm1125, %v1110, 0
        %v1160 = vsel %vm1125, %v1111, 0
        %v1163 = vsel %vm1125, %v1112, 0
        %v1166 = vsel %vm1125, %v1113, 0
        %v1169 = vsel %vm1125, %v1114, 0
        %v1172 = vsel %vm1125, %v1115, 0
        %1174 = vmatprep.subr.mxu0 0.0
        %1175 = vmatpush1.msra.mxu0 %v1116
        %1176 = vmatprep.subr.mxu0 0.0
        %1177 = vmatpush1.msra.mxu0 %v1117
        %1178 = vmatprep.subr.mxu0 0.0
        %1179 = vmatpush1.msra.mxu0 %v1118
        %1180 = vmatprep.subr.mxu0 0.0
        %1181 = vmatpush1.msra.mxu0 %v1119
        %1182 = vmatprep.subr.mxu0 0.0
        %1183 = vmatpush1.msra.mxu0 %v1120
        %1184 = vmatprep.subr.mxu0 0.0
        %1185 = vmatpush1.msra.mxu0 %v1121
        %1186 = vmatprep.subr.mxu0 0.0
        %1187 = vmatpush1.msra.mxu0 %v1122
        %1188 = vmatprep.subr.mxu0 0.0
        %1189 = vmatpush1.msra.mxu0 %v1123
        %1190 = vmatprep.subr.mxu0 0.0
        %1191 = vmatpush1.msra.mxu0 %v1124
        %1192 = vmatprep.subr.mxu0 0.0
        %1193 = vmatpush1.msra.mxu0 0.0
        %1194 = vmatprep.subr.mxu0 0.0
        %1195 = vmatpush1.msra.mxu0 0.0
        %1196 = vmatprep.subr.mxu0 0.0
        %1197 = vmatpush1.msra.mxu0 0.0
        %1198 = vmatprep.subr.mxu0 0.0
        %1199 = vmatpush1.msra.mxu0 0.0
        %1200 = vmatprep.subr.mxu0 0.0
        %1201 = vmatpush1.msra.mxu0 0.0
        %1202 = vmatprep.subr.mxu0 0.0
        %1203 = vmatpush1.msra.mxu0 0.0
        %1204 = vmatprep.subr.mxu0 0.0
        %1205 = vmatpush1.msra.mxu0 0.0
        %1206 = vmatprep.subr.mxu0 0.0
        %1207 = vmatpush1.msra.mxu0 0.0
        %1208 = vmatprep.subr.mxu0 0.0
        %1209 = vmatpush1.msra.mxu0 0.0
        %1210 = vmatprep.subr.mxu0 0.0
        %1211 = vmatpush1.msra.mxu0 0.0
        %1212 = vmatprep.subr.mxu0 0.0
        %1213 = vmatpush1.msra.mxu0 0.0
        %1214 = vmatprep.subr.mxu0 0.0
        %1215 = vmatpush1.msra.mxu0 0.0
        %1216 = vmatprep.subr.mxu0 0.0
        %1217 = vmatpush1.msra.mxu0 0.0
        %1218 = vmatprep.subr.mxu0 0.0
        %1219 = vmatpush1.msra.mxu0 0.0
        %1220 = vmatprep.subr.mxu0 0.0
        %1221 = vmatpush1.msra.mxu0 0.0
        %1222 = vmatprep.subr.mxu0 0.0
        %1223 = vmatpush1.msra.mxu0 0.0
        %1224 = vmatprep.subr.mxu0 0.0
        %1225 = vmatpush1.msra.mxu0 0.0
        %1226 = vmatprep.subr.mxu0 0.0
        %1227 = vmatpush1.msra.mxu0 0.0
        %1228 = vmatprep.subr.mxu0 0.0
        %1229 = vmatpush1.msra.mxu0 0.0
        %1230 = vmatprep.subr.mxu0 0.0
        %1231 = vmatpush1.msra.mxu0 0.0
        %1232 = vmatprep.subr.mxu0 0.0
        %1233 = vmatpush1.msra.mxu0 0.0
        %1234 = vmatprep.subr.mxu0 0.0
        %1235 = vmatpush1.msra.mxu0 0.0
        %1236 = vmatprep.subr.mxu0 0.0
        %1237 = vmatpush1.msra.mxu0 0.0
        %1238 = vmatprep.mubr.f32.mxu0 0.0
        %1239 = vmatmul.mubr.f32.gmra.mrb[0].mxu0 %v1127
        %v1240 = vpop.f32.mrb[0].mxu0
        %v1241 = vadd.f32 0.0, %v1240
        %v1242 = vpop.f32.mrb[0].mxu0
        %1243 = vmatprep.mubr.f32.mxu0 0.0
        %1244 = vmatmul.mubr.f32.gmra.mrb[0].mxu0 %v1130
        %v1245 = vpop.f32.mrb[0].mxu0
        %v1246 = vadd.f32 0.0, %v1245
        %v1247 = vpop.f32.mrb[0].mxu0
        %1248 = vmatprep.mubr.f32.mxu0 0.0
        %1249 = vmatmul.mubr.f32.gmra.mrb[0].mxu0 %v1133
        %v1250 = vpop.f32.mrb[0].mxu0
        %v1251 = vadd.f32 0.0, %v1250
        %v1252 = vpop.f32.mrb[0].mxu0
        %1253 = vmatprep.mubr.f32.mxu0 0.0
        %1254 = vmatmul.mubr.f32.gmra.mrb[0].mxu0 %v1136
        %v1255 = vpop.f32.mrb[0].mxu0
        %v1256 = vadd.f32 0.0, %v1255
        %v1257 = vpop.f32.mrb[0].mxu0
        %1258 = vmatprep.mubr.f32.mxu0 0.0
        %1259 = vmatmul.mubr.f32.gmra.mrb[0].mxu0 %v1139
        %v1260 = vpop.f32.mrb[0].mxu0
        %v1261 = vadd.f32 0.0, %v1260
        %v1262 = vpop.f32.mrb[0].mxu0
        %1263 = vmatprep.mubr.f32.mxu0 0.0
        %1264 = vmatmul.mubr.f32.gmra.mrb[0].mxu0 %v1142
        %v1265 = vpop.f32.mrb[0].mxu0
        %v1266 = vadd.f32 0.0, %v1265
        %v1267 = vpop.f32.mrb[0].mxu0
        %1268 = vmatprep.mubr.f32.mxu0 0.0
        %1269 = vmatmul.mubr.f32.gmra.mrb[0].mxu0 %v1145
        %v1270 = vpop.f32.mrb[0].mxu0
        %v1271 = vadd.f32 0.0, %v1270
        %v1272 = vpop.f32.mrb[0].mxu0
        %1273 = vmatprep.mubr.f32.mxu0 0.0
        %1274 = vmatmul.mubr.f32.gmra.mrb[0].mxu0 %v1148
        %v1275 = vpop.f32.mrb[0].mxu0
        %v1276 = vadd.f32 0.0, %v1275
        %v1277 = vpop.f32.mrb[0].mxu0
        %1278 = vmatprep.mubr.f32.mxu0 0.0
        %1279 = vmatmul.mubr.f32.gmra.mrb[0].mxu0 %v1151
        %v1280 = vpop.f32.mrb[0].mxu0
        %v1281 = vadd.f32 0.0, %v1280
        %v1282 = vpop.f32.mrb[0].mxu0
        %1283 = vmatprep.mubr.f32.mxu0 0.0
        %1284 = vmatmul.mubr.f32.gmra.mrb[0].mxu0 %v1154
        %v1285 = vpop.f32.mrb[0].mxu0
        %v1286 = vadd.f32 0.0, %v1285
        %v1287 = vpop.f32.mrb[0].mxu0
        %1288 = vmatprep.mubr.f32.mxu0 0.0
        %1289 = vmatmul.mubr.f32.gmra.mrb[0].mxu0 %v1157
        %v1290 = vpop.f32.mrb[0].mxu0
        %v1291 = vadd.f32 0.0, %v1290
        %v1292 = vpop.f32.mrb[0].mxu0
        %1293 = vmatprep.mubr.f32.mxu0 0.0
        %1294 = vmatmul.mubr.f32.gmra.mrb[0].mxu0 %v1160
        %v1295 = vpop.f32.mrb[0].mxu0
        %v1296 = vadd.f32 0.0, %v1295
        %v1297 = vpop.f32.mrb[0].mxu0
        %1298 = vmatprep.mubr.f32.mxu0 0.0
        %1299 = vmatmul.mubr.f32.gmra.mrb[0].mxu0 %v1163
        %v1300 = vpop.f32.mrb[0].mxu0
        %v1301 = vadd.f32 0.0, %v1300
        %v1302 = vpop.f32.mrb[0].mxu0
        %1303 = vmatprep.mubr.f32.mxu0 0.0
        %1304 = vmatmul.mubr.f32.gmra.mrb[0].mxu0 %v1166
        %v1305 = vpop.f32.mrb[0].mxu0
        %v1306 = vadd.f32 0.0, %v1305
        %v1307 = vpop.f32.mrb[0].mxu0
        %1308 = vmatprep.mubr.f32.mxu0 0.0
        %1309 = vmatmul.mubr.f32.gmra.mrb[0].mxu0 %v1169
        %v1310 = vpop.f32.mrb[0].mxu0
        %v1311 = vadd.f32 0.0, %v1310
        %v1312 = vpop.f32.mrb[0].mxu0
        %1313 = vmatprep.mubr.f32.mxu0 0.0
        %1314 = vmatmul.mubr.f32.gmra.mrb[0].mxu0 %v1172
        %v1315 = vpop.f32.mrb[0].mxu0
        %v1316 = vadd.f32 0.0, %v1315
        %v1317 = vpop.f32.mrb[0].mxu0
        %1318 = vdwg.mxu0
        %v1335 = vcombine.high %v1241, %v1241
        %v1337 = vunpack.c.l.s4 1983009808
        %v1338 = vunpack.c.0.s8 %v1337
        %v1339 = vlaneseq
        %v1340 = vshrl.u32 %v1339, 7
        %v1341 = vsub.s32 %v1338, %v1340
        %v1342 = vrot.slane %v1241, %v1341
        %v1344 = vunpack.c.l.s4 1983009808
        %v1345 = vunpack.c.0.s8 %v1344
        %v1346 = vlaneseq
        %v1347 = vshrl.u32 %v1346, 7
        %v1348 = vsub.s32 %v1345, %v1347
        %v1349 = vrot.slane %v1335, %v1348
        %v1350 = vcombine.high %v1342, %v1342
        %v1351 = vcombine.high %v1349, %v1349
        %v1352 = vcombine.high %v1246, %v1246
        %v1354 = vunpack.c.l.s4 1983009808
        %v1355 = vunpack.c.0.s8 %v1354
        %v1356 = vlaneseq
        %v1357 = vshrl.u32 %v1356, 7
        %v1358 = vsub.s32 %v1355, %v1357
        %v1359 = vrot.slane %v1246, %v1358
        %v1361 = vunpack.c.l.s4 1983009808
        %v1362 = vunpack.c.0.s8 %v1361
        %v1363 = vlaneseq
        %v1364 = vshrl.u32 %v1363, 7
        %v1365 = vsub.s32 %v1362, %v1364
        %v1366 = vrot.slane %v1352, %v1365
        %v1367 = vcombine.high %v1359, %v1359
        %v1368 = vcombine.high %v1366, %v1366
        %v1369 = vcombine.high %v1251, %v1251
        %v1371 = vunpack.c.l.s4 1983009808
        %v1372 = vunpack.c.0.s8 %v1371
        %v1373 = vlaneseq
        %v1374 = vshrl.u32 %v1373, 7
        %v1375 = vsub.s32 %v1372, %v1374
        %v1376 = vrot.slane %v1251, %v1375
        %v1378 = vunpack.c.l.s4 1983009808
        %v1379 = vunpack.c.0.s8 %v1378
        %v1380 = vlaneseq
        %v1381 = vshrl.u32 %v1380, 7
        %v1382 = vsub.s32 %v1379, %v1381
        %v1383 = vrot.slane %v1369, %v1382
        %v1384 = vcombine.high %v1376, %v1376
        %v1385 = vcombine.high %v1383, %v1383
        %v1386 = vcombine.high %v1256, %v1256
        %v1388 = vunpack.c.l.s4 1983009808
        %v1389 = vunpack.c.0.s8 %v1388
        %v1390 = vlaneseq
        %v1391 = vshrl.u32 %v1390, 7
        %v1392 = vsub.s32 %v1389, %v1391
        %v1393 = vrot.slane %v1256, %v1392
        %v1395 = vunpack.c.l.s4 1983009808
        %v1396 = vunpack.c.0.s8 %v1395
        %v1397 = vlaneseq
        %v1398 = vshrl.u32 %v1397, 7
        %v1399 = vsub.s32 %v1396, %v1398
        %v1400 = vrot.slane %v1386, %v1399
        %v1401 = vcombine.high %v1393, %v1393
        %v1402 = vcombine.high %v1400, %v1400
        %v1403 = vcombine.high %v1261, %v1261
        %v1405 = vunpack.c.l.s4 1983009808
        %v1406 = vunpack.c.0.s8 %v1405
        %v1407 = vlaneseq
        %v1408 = vshrl.u32 %v1407, 7
        %v1409 = vsub.s32 %v1406, %v1408
        %v1410 = vrot.slane %v1261, %v1409
        %v1412 = vunpack.c.l.s4 1983009808
        %v1413 = vunpack.c.0.s8 %v1412
        %v1414 = vlaneseq
        %v1415 = vshrl.u32 %v1414, 7
        %v1416 = vsub.s32 %v1413, %v1415
        %v1417 = vrot.slane %v1403, %v1416
        %v1418 = vcombine.high %v1410, %v1410
        %v1419 = vcombine.high %v1417, %v1417
        %v1420 = vcombine.high %v1266, %v1266
        %v1422 = vunpack.c.l.s4 1983009808
        %v1423 = vunpack.c.0.s8 %v1422
        %v1424 = vlaneseq
        %v1425 = vshrl.u32 %v1424, 7
        %v1426 = vsub.s32 %v1423, %v1425
        %v1427 = vrot.slane %v1266, %v1426
        %v1429 = vunpack.c.l.s4 1983009808
        %v1430 = vunpack.c.0.s8 %v1429
        %v1431 = vlaneseq
        %v1432 = vshrl.u32 %v1431, 7
        %v1433 = vsub.s32 %v1430, %v1432
        %v1434 = vrot.slane %v1420, %v1433
        %v1435 = vcombine.high %v1427, %v1427
        %v1436 = vcombine.high %v1434, %v1434
        %v1437 = vcombine.high %v1271, %v1271
        %v1439 = vunpack.c.l.s4 1983009808
        %v1440 = vunpack.c.0.s8 %v1439
        %v1441 = vlaneseq
        %v1442 = vshrl.u32 %v1441, 7
        %v1443 = vsub.s32 %v1440, %v1442
        %v1444 = vrot.slane %v1271, %v1443
        %v1446 = vunpack.c.l.s4 1983009808
        %v1447 = vunpack.c.0.s8 %v1446
        %v1448 = vlaneseq
        %v1449 = vshrl.u32 %v1448, 7
        %v1450 = vsub.s32 %v1447, %v1449
        %v1451 = vrot.slane %v1437, %v1450
        %v1452 = vcombine.high %v1444, %v1444
        %v1453 = vcombine.high %v1451, %v1451
        %v1454 = vcombine.high %v1276, %v1276
        %v1456 = vunpack.c.l.s4 1983009808
        %v1457 = vunpack.c.0.s8 %v1456
        %v1458 = vlaneseq
        %v1459 = vshrl.u32 %v1458, 7
        %v1460 = vsub.s32 %v1457, %v1459
        %v1461 = vrot.slane %v1276, %v1460
        %v1463 = vunpack.c.l.s4 1983009808
        %v1464 = vunpack.c.0.s8 %v1463
        %v1465 = vlaneseq
        %v1466 = vshrl.u32 %v1465, 7
        %v1467 = vsub.s32 %v1464, %v1466
        %v1468 = vrot.slane %v1454, %v1467
        %v1469 = vcombine.high %v1461, %v1461
        %v1470 = vcombine.high %v1468, %v1468
        %v1471 = vcombine.high %v1281, %v1281
        %v1473 = vunpack.c.l.s4 1983009808
        %v1474 = vunpack.c.0.s8 %v1473
        %v1475 = vlaneseq
        %v1476 = vshrl.u32 %v1475, 7
        %v1477 = vsub.s32 %v1474, %v1476
        %v1478 = vrot.slane %v1281, %v1477
        %v1480 = vunpack.c.l.s4 1983009808
        %v1481 = vunpack.c.0.s8 %v1480
        %v1482 = vlaneseq
        %v1483 = vshrl.u32 %v1482, 7
        %v1484 = vsub.s32 %v1481, %v1483
        %v1485 = vrot.slane %v1471, %v1484
        %v1486 = vcombine.high %v1478, %v1478
        %v1487 = vcombine.high %v1485, %v1485
        %v1488 = vcombine.high %v1286, %v1286
        %v1490 = vunpack.c.l.s4 1983009808
        %v1491 = vunpack.c.0.s8 %v1490
        %v1492 = vlaneseq
        %v1493 = vshrl.u32 %v1492, 7
        %v1494 = vsub.s32 %v1491, %v1493
        %v1495 = vrot.slane %v1286, %v1494
        %v1497 = vunpack.c.l.s4 1983009808
        %v1498 = vunpack.c.0.s8 %v1497
        %v1499 = vlaneseq
        %v1500 = vshrl.u32 %v1499, 7
        %v1501 = vsub.s32 %v1498, %v1500
        %v1502 = vrot.slane %v1488, %v1501
        %v1503 = vcombine.high %v1495, %v1495
        %v1504 = vcombine.high %v1502, %v1502
        %v1505 = vcombine.high %v1291, %v1291
        %v1507 = vunpack.c.l.s4 1983009808
        %v1508 = vunpack.c.0.s8 %v1507
        %v1509 = vlaneseq
        %v1510 = vshrl.u32 %v1509, 7
        %v1511 = vsub.s32 %v1508, %v1510
        %v1512 = vrot.slane %v1291, %v1511
        %v1514 = vunpack.c.l.s4 1983009808
        %v1515 = vunpack.c.0.s8 %v1514
        %v1516 = vlaneseq
        %v1517 = vshrl.u32 %v1516, 7
        %v1518 = vsub.s32 %v1515, %v1517
        %v1519 = vrot.slane %v1505, %v1518
        %v1520 = vcombine.high %v1512, %v1512
        %v1521 = vcombine.high %v1519, %v1519
        %v1522 = vcombine.high %v1296, %v1296
        %v1524 = vunpack.c.l.s4 1983009808
        %v1525 = vunpack.c.0.s8 %v1524
        %v1526 = vlaneseq
        %v1527 = vshrl.u32 %v1526, 7
        %v1528 = vsub.s32 %v1525, %v1527
        %v1529 = vrot.slane %v1296, %v1528
        %v1531 = vunpack.c.l.s4 1983009808
        %v1532 = vunpack.c.0.s8 %v1531
        %v1533 = vlaneseq
        %v1534 = vshrl.u32 %v1533, 7
        %v1535 = vsub.s32 %v1532, %v1534
        %v1536 = vrot.slane %v1522, %v1535
        %v1537 = vcombine.high %v1529, %v1529
        %v1538 = vcombine.high %v1536, %v1536
        %v1539 = vcombine.high %v1301, %v1301
        %v1541 = vunpack.c.l.s4 1983009808
        %v1542 = vunpack.c.0.s8 %v1541
        %v1543 = vlaneseq
        %v1544 = vshrl.u32 %v1543, 7
        %v1545 = vsub.s32 %v1542, %v1544
        %v1546 = vrot.slane %v1301, %v1545
        %v1548 = vunpack.c.l.s4 1983009808
        %v1549 = vunpack.c.0.s8 %v1548
        %v1550 = vlaneseq
        %v1551 = vshrl.u32 %v1550, 7
        %v1552 = vsub.s32 %v1549, %v1551
        %v1553 = vrot.slane %v1539, %v1552
        %v1554 = vcombine.high %v1546, %v1546
        %v1555 = vcombine.high %v1553, %v1553
        %v1556 = vcombine.high %v1306, %v1306
        %v1558 = vunpack.c.l.s4 1983009808
        %v1559 = vunpack.c.0.s8 %v1558
        %v1560 = vlaneseq
        %v1561 = vshrl.u32 %v1560, 7
        %v1562 = vsub.s32 %v1559, %v1561
        %v1563 = vrot.slane %v1306, %v1562
        %v1565 = vunpack.c.l.s4 1983009808
        %v1566 = vunpack.c.0.s8 %v1565
        %v1567 = vlaneseq
        %v1568 = vshrl.u32 %v1567, 7
        %v1569 = vsub.s32 %v1566, %v1568
        %v1570 = vrot.slane %v1556, %v1569
        %v1571 = vcombine.high %v1563, %v1563
        %v1572 = vcombine.high %v1570, %v1570
        %v1573 = vcombine.high %v1311, %v1311
        %v1575 = vunpack.c.l.s4 1983009808
        %v1576 = vunpack.c.0.s8 %v1575
        %v1577 = vlaneseq
        %v1578 = vshrl.u32 %v1577, 7
        %v1579 = vsub.s32 %v1576, %v1578
        %v1580 = vrot.slane %v1311, %v1579
        %v1582 = vunpack.c.l.s4 1983009808
        %v1583 = vunpack.c.0.s8 %v1582
        %v1584 = vlaneseq
        %v1585 = vshrl.u32 %v1584, 7
        %v1586 = vsub.s32 %v1583, %v1585
        %v1587 = vrot.slane %v1573, %v1586
        %v1588 = vcombine.high %v1580, %v1580
        %v1589 = vcombine.high %v1587, %v1587
        %v1590 = vcombine.high %v1316, %v1316
        %v1592 = vunpack.c.l.s4 1983009808
        %v1593 = vunpack.c.0.s8 %v1592
        %v1594 = vlaneseq
        %v1595 = vshrl.u32 %v1594, 7
        %v1596 = vsub.s32 %v1593, %v1595
        %v1597 = vrot.slane %v1316, %v1596
        %v1599 = vunpack.c.l.s4 1983009808
        %v1600 = vunpack.c.0.s8 %v1599
        %v1601 = vlaneseq
        %v1602 = vshrl.u32 %v1601, 7
        %v1603 = vsub.s32 %v1600, %v1602
        %v1604 = vrot.slane %v1590, %v1603
        %v1605 = vcombine.high %v1597, %v1597
        %v1606 = vcombine.high %v1604, %v1604
        %v1671 = vadd.f32 %v1342, %v1376
        %v1672 = vadd.f32 %v1350, %v1384
        %v1673 = vadd.f32 %v1349, %v1383
        %v1674 = vadd.f32 %v1351, %v1385
        %v1675 = vadd.f32 %v1359, %v1393
        %v1676 = vadd.f32 %v1367, %v1401
        %v1677 = vadd.f32 %v1366, %v1400
        %v1678 = vadd.f32 %v1368, %v1402
        %v1679 = vadd.f32 %v1410, %v1444
        %v1680 = vadd.f32 %v1418, %v1452
        %v1681 = vadd.f32 %v1417, %v1451
        %v1682 = vadd.f32 %v1419, %v1453
        %v1683 = vadd.f32 %v1427, %v1461
        %v1684 = vadd.f32 %v1435, %v1469
        %v1685 = vadd.f32 %v1434, %v1468
        %v1686 = vadd.f32 %v1436, %v1470
        %v1687 = vadd.f32 %v1478, %v1512
        %v1688 = vadd.f32 %v1486, %v1520
        %v1689 = vadd.f32 %v1485, %v1519
        %v1690 = vadd.f32 %v1487, %v1521
        %v1691 = vadd.f32 %v1495, %v1529
        %v1692 = vadd.f32 %v1503, %v1537
        %v1693 = vadd.f32 %v1502, %v1536
        %v1694 = vadd.f32 %v1504, %v1538
        %v1695 = vadd.f32 %v1546, %v1580
        %v1696 = vadd.f32 %v1554, %v1588
        %v1697 = vadd.f32 %v1553, %v1587
        %v1698 = vadd.f32 %v1555, %v1589
        %v1699 = vadd.f32 %v1563, %v1597
        %v1700 = vadd.f32 %v1571, %v1605
        %v1701 = vadd.f32 %v1570, %v1604
        %v1702 = vadd.f32 %v1572, %v1606
        %v1703 = vrot.slane %v1342, 7
        %v1704 = vrot.slane %v1703, 2
        %v1705 = vrot.slane %v1350, 7
        %v1706 = vrot.slane %v1705, 2
        %v1707 = vrot.slane %v1349, 7
        %v1708 = vrot.slane %v1707, 2
        %v1709 = vrot.slane %v1351, 7
        %v1710 = vrot.slane %v1709, 2
        %v1711 = vrot.slane %v1359, 7
        %v1712 = vrot.slane %v1711, 2
        %v1713 = vrot.slane %v1367, 7
        %v1714 = vrot.slane %v1713, 2
        %v1715 = vrot.slane %v1366, 7
        %v1716 = vrot.slane %v1715, 2
        %v1717 = vrot.slane %v1368, 7
        %v1718 = vrot.slane %v1717, 2
        %v1719 = vrot.slane %v1410, 7
        %v1720 = vrot.slane %v1719, 2
        %v1721 = vrot.slane %v1418, 7
        %v1722 = vrot.slane %v1721, 2
        %v1723 = vrot.slane %v1417, 7
        %v1724 = vrot.slane %v1723, 2
        %v1725 = vrot.slane %v1419, 7
        %v1726 = vrot.slane %v1725, 2
        %v1727 = vrot.slane %v1427, 7
        %v1728 = vrot.slane %v1727, 2
        %v1729 = vrot.slane %v1435, 7
        %v1730 = vrot.slane %v1729, 2
        %v1731 = vrot.slane %v1434, 7
        %v1732 = vrot.slane %v1731, 2
        %v1733 = vrot.slane %v1436, 7
        %v1734 = vrot.slane %v1733, 2
        %v1735 = vrot.slane %v1478, 7
        %v1736 = vrot.slane %v1735, 2
        %v1737 = vrot.slane %v1486, 7
        %v1738 = vrot.slane %v1737, 2
        %v1739 = vrot.slane %v1485, 7
        %v1740 = vrot.slane %v1739, 2
        %v1741 = vrot.slane %v1487, 7
        %v1742 = vrot.slane %v1741, 2
        %v1743 = vrot.slane %v1495, 7
        %v1744 = vrot.slane %v1743, 2
        %v1745 = vrot.slane %v1503, 7
        %v1746 = vrot.slane %v1745, 2
        %v1747 = vrot.slane %v1502, 7
        %v1748 = vrot.slane %v1747, 2
        %v1749 = vrot.slane %v1504, 7
        %v1750 = vrot.slane %v1749, 2
        %v1751 = vrot.slane %v1546, 7
        %v1752 = vrot.slane %v1751, 2
        %v1753 = vrot.slane %v1554, 7
        %v1754 = vrot.slane %v1753, 2
        %v1755 = vrot.slane %v1553, 7
        %v1756 = vrot.slane %v1755, 2
        %v1757 = vrot.slane %v1555, 7
        %v1758 = vrot.slane %v1757, 2
        %v1759 = vrot.slane %v1563, 7
        %v1760 = vrot.slane %v1759, 2
        %v1761 = vrot.slane %v1571, 7
        %v1762 = vrot.slane %v1761, 2
        %v1763 = vrot.slane %v1570, 7
        %v1764 = vrot.slane %v1763, 2
        %v1765 = vrot.slane %v1572, 7
        %v1766 = vrot.slane %v1765, 2
        %v1799 = vadd.f32 %v1671, %v1704
        %v1800 = vadd.f32 %v1672, %v1706
        %v1801 = vadd.f32 %v1673, %v1708
        %v1802 = vadd.f32 %v1674, %v1710
        %v1803 = vadd.f32 %v1675, %v1712
        %v1804 = vadd.f32 %v1676, %v1714
        %v1805 = vadd.f32 %v1677, %v1716
        %v1806 = vadd.f32 %v1678, %v1718
        %v1807 = vadd.f32 %v1679, %v1720
        %v1808 = vadd.f32 %v1680, %v1722
        %v1809 = vadd.f32 %v1681, %v1724
        %v1810 = vadd.f32 %v1682, %v1726
        %v1811 = vadd.f32 %v1683, %v1728
        %v1812 = vadd.f32 %v1684, %v1730
        %v1813 = vadd.f32 %v1685, %v1732
        %v1814 = vadd.f32 %v1686, %v1734
        %v1815 = vadd.f32 %v1687, %v1736
        %v1816 = vadd.f32 %v1688, %v1738
        %v1817 = vadd.f32 %v1689, %v1740
        %v1818 = vadd.f32 %v1690, %v1742
        %v1819 = vadd.f32 %v1691, %v1744
        %v1820 = vadd.f32 %v1692, %v1746
        %v1821 = vadd.f32 %v1693, %v1748
        %v1822 = vadd.f32 %v1694, %v1750
        %v1823 = vadd.f32 %v1695, %v1752
        %v1824 = vadd.f32 %v1696, %v1754
        %v1825 = vadd.f32 %v1697, %v1756
        %v1826 = vadd.f32 %v1698, %v1758
        %v1827 = vadd.f32 %v1699, %v1760
        %v1828 = vadd.f32 %v1700, %v1762
        %v1829 = vadd.f32 %v1701, %v1764
        %v1830 = vadd.f32 %v1702, %v1766
        %v1831 = vrot.slane %v1376, 7
        %v1832 = vrot.slane %v1831, 2
        %v1833 = vrot.slane %v1384, 7
        %v1834 = vrot.slane %v1833, 2
        %v1835 = vrot.slane %v1383, 7
        %v1836 = vrot.slane %v1835, 2
        %v1837 = vrot.slane %v1385, 7
        %v1838 = vrot.slane %v1837, 2
        %v1839 = vrot.slane %v1393, 7
        %v1840 = vrot.slane %v1839, 2
        %v1841 = vrot.slane %v1401, 7
        %v1842 = vrot.slane %v1841, 2
        %v1843 = vrot.slane %v1400, 7
        %v1844 = vrot.slane %v1843, 2
        %v1845 = vrot.slane %v1402, 7
        %v1846 = vrot.slane %v1845, 2
        %v1847 = vrot.slane %v1444, 7
        %v1848 = vrot.slane %v1847, 2
        %v1849 = vrot.slane %v1452, 7
        %v1850 = vrot.slane %v1849, 2
        %v1851 = vrot.slane %v1451, 7
        %v1852 = vrot.slane %v1851, 2
        %v1853 = vrot.slane %v1453, 7
        %v1854 = vrot.slane %v1853, 2
        %v1855 = vrot.slane %v1461, 7
        %v1856 = vrot.slane %v1855, 2
        %v1857 = vrot.slane %v1469, 7
        %v1858 = vrot.slane %v1857, 2
        %v1859 = vrot.slane %v1468, 7
        %v1860 = vrot.slane %v1859, 2
        %v1861 = vrot.slane %v1470, 7
        %v1862 = vrot.slane %v1861, 2
        %v1863 = vrot.slane %v1512, 7
        %v1864 = vrot.slane %v1863, 2
        %v1865 = vrot.slane %v1520, 7
        %v1866 = vrot.slane %v1865, 2
        %v1867 = vrot.slane %v1519, 7
        %v1868 = vrot.slane %v1867, 2
        %v1869 = vrot.slane %v1521, 7
        %v1870 = vrot.slane %v1869, 2
        %v1871 = vrot.slane %v1529, 7
        %v1872 = vrot.slane %v1871, 2
        %v1873 = vrot.slane %v1537, 7
        %v1874 = vrot.slane %v1873, 2
        %v1875 = vrot.slane %v1536, 7
        %v1876 = vrot.slane %v1875, 2
        %v1877 = vrot.slane %v1538, 7
        %v1878 = vrot.slane %v1877, 2
        %v1879 = vrot.slane %v1580, 7
        %v1880 = vrot.slane %v1879, 2
        %v1881 = vrot.slane %v1588, 7
        %v1882 = vrot.slane %v1881, 2
        %v1883 = vrot.slane %v1587, 7
        %v1884 = vrot.slane %v1883, 2
        %v1885 = vrot.slane %v1589, 7
        %v1886 = vrot.slane %v1885, 2
        %v1887 = vrot.slane %v1597, 7
        %v1888 = vrot.slane %v1887, 2
        %v1889 = vrot.slane %v1605, 7
        %v1890 = vrot.slane %v1889, 2
        %v1891 = vrot.slane %v1604, 7
        %v1892 = vrot.slane %v1891, 2
        %v1893 = vrot.slane %v1606, 7
        %v1894 = vrot.slane %v1893, 2
        %v1927 = vadd.f32 %v1799, %v1832
        %v1928 = vadd.f32 %v1800, %v1834
        %v1929 = vadd.f32 %v1801, %v1836
        %v1930 = vadd.f32 %v1802, %v1838
        %v1931 = vadd.f32 %v1803, %v1840
        %v1932 = vadd.f32 %v1804, %v1842
        %v1933 = vadd.f32 %v1805, %v1844
        %v1934 = vadd.f32 %v1806, %v1846
        %v1935 = vadd.f32 %v1807, %v1848
        %v1936 = vadd.f32 %v1808, %v1850
        %v1937 = vadd.f32 %v1809, %v1852
        %v1938 = vadd.f32 %v1810, %v1854
        %v1939 = vadd.f32 %v1811, %v1856
        %v1940 = vadd.f32 %v1812, %v1858
        %v1941 = vadd.f32 %v1813, %v1860
        %v1942 = vadd.f32 %v1814, %v1862
        %v1943 = vadd.f32 %v1815, %v1864
        %v1944 = vadd.f32 %v1816, %v1866
        %v1945 = vadd.f32 %v1817, %v1868
        %v1946 = vadd.f32 %v1818, %v1870
        %v1947 = vadd.f32 %v1819, %v1872
        %v1948 = vadd.f32 %v1820, %v1874
        %v1949 = vadd.f32 %v1821, %v1876
        %v1950 = vadd.f32 %v1822, %v1878
        %v1951 = vadd.f32 %v1823, %v1880
        %v1952 = vadd.f32 %v1824, %v1882
        %v1953 = vadd.f32 %v1825, %v1884
        %v1954 = vadd.f32 %v1826, %v1886
        %v1955 = vadd.f32 %v1827, %v1888
        %v1956 = vadd.f32 %v1828, %v1890
        %v1957 = vadd.f32 %v1829, %v1892
        %v1958 = vadd.f32 %v1830, %v1894
        %v1959 = vmul.f32 %v1927, 0.25
        %v1960 = vmul.f32 %v1928, 0.25
        %v1961 = vmul.f32 %v1929, 0.25
        %v1962 = vmul.f32 %v1930, 0.25
        %v1963 = vmul.f32 %v1931, 0.25
        %v1964 = vmul.f32 %v1932, 0.25
        %v1965 = vmul.f32 %v1933, 0.25
        %v1966 = vmul.f32 %v1934, 0.25
        %v1967 = vmul.f32 %v1935, 0.25
        %v1968 = vmul.f32 %v1936, 0.25
        %v1969 = vmul.f32 %v1937, 0.25
        %v1970 = vmul.f32 %v1938, 0.25
        %v1971 = vmul.f32 %v1939, 0.25
        %v1972 = vmul.f32 %v1940, 0.25
        %v1973 = vmul.f32 %v1941, 0.25
        %v1974 = vmul.f32 %v1942, 0.25
        %v1975 = vmul.f32 %v1943, 0.25
        %v1976 = vmul.f32 %v1944, 0.25
        %v1977 = vmul.f32 %v1945, 0.25
        %v1978 = vmul.f32 %v1946, 0.25
        %v1979 = vmul.f32 %v1947, 0.25
        %v1980 = vmul.f32 %v1948, 0.25
        %v1981 = vmul.f32 %v1949, 0.25
        %v1982 = vmul.f32 %v1950, 0.25
        %v1983 = vmul.f32 %v1951, 0.25
        %v1984 = vmul.f32 %v1952, 0.25
        %v1985 = vmul.f32 %v1953, 0.25
        %v1986 = vmul.f32 %v1954, 0.25
        %v1987 = vmul.f32 %v1955, 0.25
        %v1988 = vmul.f32 %v1956, 0.25
        %v1989 = vmul.f32 %v1957, 0.25
        %v1990 = vmul.f32 %v1958, 0.25
        %v1991 = vld [vmem:[%s3] sm:$0x1]
        %v1993 = vlaneseq
        %v1994 = vshrl.u32 %v1993, 7
        %v1995 = vsub.s32 0, %v1994
        %v1996 = vrot.slane %v1991, %v1995
        %v1997 = vcombine.high %v1996, %v1996
        %v1999 = vunpack.c.l.s4 1983009808
        %v2000 = vunpack.c.0.s8 %v1999
        %v2001 = vlaneseq
        %v2002 = vshrl.u32 %v2001, 7
        %v2003 = vsub.s32 %v2000, %v2002
        %v2004 = vrot.slane %v1996, %v2003
        %v2006 = vunpack.c.l.s4 1983009808
        %v2007 = vunpack.c.0.s8 %v2006
        %v2008 = vlaneseq
        %v2009 = vshrl.u32 %v2008, 7
        %v2010 = vsub.s32 %v2007, %v2009
        %v2011 = vrot.slane %v1997, %v2010
        %v2012 = vcombine.high %v2004, %v2004
        %v2013 = vcombine.high %v2011, %v2011
        %v2014 = vrot.slane %v2004, 1
        %v2015 = vrot.slane %v2012, 1
        %v2016 = vrot.slane %v2011, 1
        %v2017 = vrot.slane %v2013, 1
        %v2026 = vadd.f32 %v1959, %v2004
        %v2027 = vadd.f32 %v1960, %v2014
        %v2028 = vadd.f32 %v1961, %v2012
        %v2029 = vadd.f32 %v1962, %v2015
        %v2030 = vadd.f32 %v1963, %v2011
        %v2031 = vadd.f32 %v1964, %v2016
        %v2032 = vadd.f32 %v1965, %v2013
        %v2033 = vadd.f32 %v1966, %v2017
        %v2034 = vadd.f32 %v1967, %v2004
        %v2035 = vadd.f32 %v1968, %v2014
        %v2036 = vadd.f32 %v1969, %v2012
        %v2037 = vadd.f32 %v1970, %v2015
        %v2038 = vadd.f32 %v1971, %v2011
        %v2039 = vadd.f32 %v1972, %v2016
        %v2040 = vadd.f32 %v1973, %v2013
        %v2041 = vadd.f32 %v1974, %v2017
        %v2042 = vadd.f32 %v1975, %v2004
        %v2043 = vadd.f32 %v1976, %v2014
        %v2044 = vadd.f32 %v1977, %v2012
        %v2045 = vadd.f32 %v1978, %v2015
        %v2046 = vadd.f32 %v1979, %v2011
        %v2047 = vadd.f32 %v1980, %v2016
        %v2048 = vadd.f32 %v1981, %v2013
        %v2049 = vadd.f32 %v1982, %v2017
        %v2050 = vadd.f32 %v1983, %v2004
        %v2051 = vadd.f32 %v1984, %v2014
        %v2052 = vadd.f32 %v1985, %v2012
        %v2053 = vadd.f32 %v1986, %v2015
        %v2054 = vadd.f32 %v1987, %v2011
        %v2055 = vadd.f32 %v1988, %v2016
        %v2056 = vadd.f32 %v1989, %v2013
        %v2057 = vadd.f32 %v1990, %v2017
        %v2090 = vlaneseq
        %v2091 = vshrl.u32 %v2090, 7
        %v2092 = vsub.s32 0, %v2091
        %v2093 = vrot.slane %v2026, %v2092
        %v2094 = vlaneseq
        %v2095 = vshrl.u32 %v2094, 7
        %v2096 = vsub.s32 0, %v2095
        %v2097 = vrot.slane %v2027, %v2096
        %v2098 = vlaneseq
        %v2099 = vshrl.u32 %v2098, 7
        %v2100 = vsub.s32 0, %v2099
        %v2101 = vrot.slane %v2028, %v2100
        %v2102 = vlaneseq
        %v2103 = vshrl.u32 %v2102, 7
        %v2104 = vsub.s32 0, %v2103
        %v2105 = vrot.slane %v2029, %v2104
        %v2106 = vlaneseq
        %v2107 = vshrl.u32 %v2106, 7
        %v2108 = vsub.s32 0, %v2107
        %v2109 = vrot.slane %v2030, %v2108
        %v2110 = vlaneseq
        %v2111 = vshrl.u32 %v2110, 7
        %v2112 = vsub.s32 0, %v2111
        %v2113 = vrot.slane %v2031, %v2112
        %v2114 = vlaneseq
        %v2115 = vshrl.u32 %v2114, 7
        %v2116 = vsub.s32 0, %v2115
        %v2117 = vrot.slane %v2032, %v2116
        %v2118 = vlaneseq
        %v2119 = vshrl.u32 %v2118, 7
        %v2120 = vsub.s32 0, %v2119
        %v2121 = vrot.slane %v2033, %v2120
        %v2122 = vlaneseq
        %v2123 = vshrl.u32 %v2122, 7
        %v2124 = vsub.s32 0, %v2123
        %v2125 = vrot.slane %v2034, %v2124
        %v2126 = vlaneseq
        %v2127 = vshrl.u32 %v2126, 7
        %v2128 = vsub.s32 0, %v2127
        %v2129 = vrot.slane %v2035, %v2128
        %v2130 = vlaneseq
        %v2131 = vshrl.u32 %v2130, 7
        %v2132 = vsub.s32 0, %v2131
        %v2133 = vrot.slane %v2036, %v2132
        %v2134 = vlaneseq
        %v2135 = vshrl.u32 %v2134, 7
        %v2136 = vsub.s32 0, %v2135
        %v2137 = vrot.slane %v2037, %v2136
        %v2138 = vlaneseq
        %v2139 = vshrl.u32 %v2138, 7
        %v2140 = vsub.s32 0, %v2139
        %v2141 = vrot.slane %v2038, %v2140
        %v2142 = vlaneseq
        %v2143 = vshrl.u32 %v2142, 7
        %v2144 = vsub.s32 0, %v2143
        %v2145 = vrot.slane %v2039, %v2144
        %v2146 = vlaneseq
        %v2147 = vshrl.u32 %v2146, 7
        %v2148 = vsub.s32 0, %v2147
        %v2149 = vrot.slane %v2040, %v2148
        %v2150 = vlaneseq
        %v2151 = vshrl.u32 %v2150, 7
        %v2152 = vsub.s32 0, %v2151
        %v2153 = vrot.slane %v2041, %v2152
        %v2154 = vlaneseq
        %v2155 = vshrl.u32 %v2154, 7
        %v2156 = vsub.s32 0, %v2155
        %v2157 = vrot.slane %v2042, %v2156
        %v2158 = vlaneseq
        %v2159 = vshrl.u32 %v2158, 7
        %v2160 = vsub.s32 0, %v2159
        %v2161 = vrot.slane %v2043, %v2160
        %v2162 = vlaneseq
        %v2163 = vshrl.u32 %v2162, 7
        %v2164 = vsub.s32 0, %v2163
        %v2165 = vrot.slane %v2044, %v2164
        %v2166 = vlaneseq
        %v2167 = vshrl.u32 %v2166, 7
        %v2168 = vsub.s32 0, %v2167
        %v2169 = vrot.slane %v2045, %v2168
        %v2170 = vlaneseq
        %v2171 = vshrl.u32 %v2170, 7
        %v2172 = vsub.s32 0, %v2171
        %v2173 = vrot.slane %v2046, %v2172
        %v2174 = vlaneseq
        %v2175 = vshrl.u32 %v2174, 7
        %v2176 = vsub.s32 0, %v2175
        %v2177 = vrot.slane %v2047, %v2176
        %v2178 = vlaneseq
        %v2179 = vshrl.u32 %v2178, 7
        %v2180 = vsub.s32 0, %v2179
        %v2181 = vrot.slane %v2048, %v2180
        %v2182 = vlaneseq
        %v2183 = vshrl.u32 %v2182, 7
        %v2184 = vsub.s32 0, %v2183
        %v2185 = vrot.slane %v2049, %v2184
        %v2186 = vlaneseq
        %v2187 = vshrl.u32 %v2186, 7
        %v2188 = vsub.s32 0, %v2187
        %v2189 = vrot.slane %v2050, %v2188
        %v2190 = vlaneseq
        %v2191 = vshrl.u32 %v2190, 7
        %v2192 = vsub.s32 0, %v2191
        %v2193 = vrot.slane %v2051, %v2192
        %v2194 = vlaneseq
        %v2195 = vshrl.u32 %v2194, 7
        %v2196 = vsub.s32 0, %v2195
        %v2197 = vrot.slane %v2052, %v2196
        %v2198 = vlaneseq
        %v2199 = vshrl.u32 %v2198, 7
        %v2200 = vsub.s32 0, %v2199
        %v2201 = vrot.slane %v2053, %v2200
        %v2202 = vlaneseq
        %v2203 = vshrl.u32 %v2202, 7
        %v2204 = vsub.s32 0, %v2203
        %v2205 = vrot.slane %v2054, %v2204
        %v2206 = vlaneseq
        %v2207 = vshrl.u32 %v2206, 7
        %v2208 = vsub.s32 0, %v2207
        %v2209 = vrot.slane %v2055, %v2208
        %v2210 = vlaneseq
        %v2211 = vshrl.u32 %v2210, 7
        %v2212 = vsub.s32 0, %v2211
        %v2213 = vrot.slane %v2056, %v2212
        %v2214 = vlaneseq
        %v2215 = vshrl.u32 %v2214, 7
        %v2216 = vsub.s32 0, %v2215
        %v2217 = vrot.slane %v2057, %v2216
        %vm2218 = vcmask 1041409
        %v2219 = vsel %vm2218, %v2097, %v2093
        %vm2220 = vcmask 1042434
        %v2221 = vsel %vm2220, %v2101, %v2219
        %vm2222 = vcmask 1043459
        %v2223 = vsel %vm2222, %v2105, %v2221
        %vm2224 = vcmask 1044484
        %v2225 = vsel %vm2224, %v2109, %v2223
        %vm2226 = vcmask 1045509
        %v2227 = vsel %vm2226, %v2113, %v2225
        %vm2228 = vcmask 1046534
        %v2229 = vsel %vm2228, %v2117, %v2227
        %vm2230 = vcmask 1047559
        %v2231 = vsel %vm2230, %v2121, %v2229
        %v2232 = vsel %vm2218, %v2129, %v2125
        %v2233 = vsel %vm2220, %v2133, %v2232
        %v2234 = vsel %vm2222, %v2137, %v2233
        %v2235 = vsel %vm2224, %v2141, %v2234
        %v2236 = vsel %vm2226, %v2145, %v2235
        %v2237 = vsel %vm2228, %v2149, %v2236
        %v2238 = vsel %vm2230, %v2153, %v2237
        %v2239 = vsel %vm2218, %v2161, %v2157
        %v2240 = vsel %vm2220, %v2165, %v2239
        %v2241 = vsel %vm2222, %v2169, %v2240
        %v2242 = vsel %vm2224, %v2173, %v2241
        %v2243 = vsel %vm2226, %v2177, %v2242
        %v2244 = vsel %vm2228, %v2181, %v2243
        %v2245 = vsel %vm2230, %v2185, %v2244
        %v2246 = vsel %vm2218, %v2193, %v2189
        %v2247 = vsel %vm2220, %v2197, %v2246
        %v2248 = vsel %vm2222, %v2201, %v2247
        %v2249 = vsel %vm2224, %v2205, %v2248
        %v2250 = vsel %vm2226, %v2209, %v2249
        %v2251 = vsel %vm2228, %v2213, %v2250
        %v2252 = vsel %vm2230, %v2217, %v2251
        %2257 = vst [vmem:[%s257] sm:$0xff] %v2231
        %2258 = vst [vmem:[%s257 + $0x8] sm:$0xff] %v2238
        %2259 = vst [vmem:[%s257 + $0x10] sm:$0xff] %v2245
        %2260 = vst [vmem:[%s257 + $0x18] sm:$0xff] %v2252
        %s2261 = sand.u32 %s138, 1
        %s2262 = scalar_lea.sflag [#allocation4], %s2261
        %s2263 = sand.u32 %s138, 1
        %s2264 = smul.addr %s2263, 32
        %s2265 = scalar_lea.vmem [#allocation3], %s2264
        // Predicated region
        $region37: #{tpu_custom_call.1} parent=35 // pred_check
          %p2266 = pneg %p148
        $region38: #{tpu_custom_call.1} parent=35 // pred_check_branch
          %2268 = sbr.rel (%p2266) target = $region40
        $region39: #{tpu_custom_call.1} parent=35 // pred_region
          %s2269 = smul.u32 4, %s23
          %s2271 = ssub.s32 512, 512
          %2272 = vsyncadd %s2262, %s2271
          %s2273 = smul.addr %s22, 8
          %s2274 = sadd.s32 %s2269, %s2273
          %s2275 = smul.addr %s2274, 128
          %s2276 = scalar_lea.hbm %s4, %s2275
          %s2277 = sshll.u32 %s2265, 4
          %s2278 = int_to_ptr.vmem [resolvable:$true] %s2277
          %2283 = dma.vmem_to_hbm [thread:$0]  %s2278, 512, %s2276, %s2262, 128, 128, 8
        $region40: #{tpu_custom_call.1} parent=35 // pred_fallthru
          _
      $region36: #{tpu_custom_call.1} parent=5 // pred_fallthru
        _
      %p2284 = scmp.le.s32.totalorder 2, %s13
      // Predicated region
      $region41: #{tpu_custom_call.1} parent=5 // pred_check
        %p2285 = pneg %p2284
      $region42: #{tpu_custom_call.1} parent=5 // pred_check_branch
        %2287 = sbr.rel (%p2285) target = $region44
      $region43: #{tpu_custom_call.1} parent=5 // pred_region
        %s2288 = ssub.s32 %s13, 2
        // Predicated region
        $region45: #{tpu_custom_call.1} parent=43 // pred_check
          %p2289 = pneg %p154
        $region46: #{tpu_custom_call.1} parent=43 // pred_check_branch
          %2291 = sbr.rel (%p2289) target = $region48
        $region47: #{tpu_custom_call.1} parent=43 // pred_region
          %s2292 = sand.u32 %s139, 1
          %s2293 = scalar_lea.sflag [#allocation4], %s2292
          %s2294 = sand.u32 %s139, 1
          %s2295 = smul.addr %s2294, 32
          %s2296 = scalar_lea.vmem [#allocation3], %s2295
          %2297 = dma.done %s2293, 512
        $region48: #{tpu_custom_call.1} parent=43 // pred_fallthru
          _
      $region44: #{tpu_custom_call.1} parent=5 // pred_fallthru
        _
    $region6: #{tpu_custom_call.1} parent=1 // loop_footer
      %s17 = sadd.s32 1, %s13
    $region7: #{tpu_custom_call.1} parent=1 // loop_footer_branch
      %12 = sbr.rel target = $region3
    $region8: #{tpu_custom_call.1} parent=1 // loop_exit
      _
    %2298 = vsyncpa [#allocation4], 1
    %s2299 = scalar_lea.sflag [#allocation4], 1
    %2300 = vsyncpa %s2299, 1

</llo_original>
